<compile_context>
chip_gen: v7x
topology: tpu7x:2x2x1
jax: 0.10.0
libtpu: 0.0.40
codegen_flags: <defaults>
</compile_context>

<pallas_src>
import functools
import math

import numpy as np
import jax
import jax.numpy as jnp
from jax import lax
from jax.experimental import pallas as pl
from jax.experimental.pallas import tpu as pltpu


def _round_up(x, m):
    return (x + m - 1) // m * m


# --------------------------------------------------------------------------
# Pallas kernel: LSTM recurrence for one layer / one direction.
# grid = (batch_blocks [parallel], time_blocks [arbitrary / serial]).
# --------------------------------------------------------------------------
def _lstm_scan_kernel(xw_ref, len_ref, whh_ref, out_ref, hlast_ref,
                      h_scr, c_scr, *, time_block, reverse, hidden_pad):
    tb = pl.program_id(1)
    nt = pl.num_programs(1)

    @pl.when(tb == 0)
    def _():
        h_scr[...] = jnp.zeros_like(h_scr)
        c_scr[...] = jnp.zeros_like(c_scr)

    lens = len_ref[...]            # (BB, 1) int32, loaded once per grid step
    whh = whh_ref[...]             # (Hp, 4Hp) bf16 weights, loaded once
    Hp = hidden_pad

    # Physical time block handled by this grid step (reverse direction walks
    # the time blocks backwards purely via indexing — no data reversal).
    t_block = (nt - 1 - tb) if reverse else tb
    t_base = t_block * time_block

    def step(s, carry):
        l = (time_block - 1 - s) if reverse else s     # local physical index
        t = t_base + l                                  # physical timestep
        h = h_scr[...]                                  # (BB, Hp) f32
        c = c_scr[...]                                  # (BB, Hp) f32

        # Serial-path compute only: xW[t] (precomputed, bias folded in) plus
        # the recurrent matmul on the MXU with f32 accumulation.
        gates = xw_ref[l].astype(jnp.float32) + jnp.dot(
            h.astype(whh.dtype), whh, preferred_element_type=jnp.float32)

        i_g = jax.nn.sigmoid(gates[:, 0 * Hp:1 * Hp])   # EUP transcendentals
        f_g = jax.nn.sigmoid(gates[:, 1 * Hp:2 * Hp])
        g_g = jnp.tanh(gates[:, 2 * Hp:3 * Hp])
        o_g = jax.nn.sigmoid(gates[:, 3 * Hp:4 * Hp])

        c_new = f_g * c + i_g * g_g
        h_new = o_g * jnp.tanh(c_new)

        m = t < lens                                    # (BB, 1) bool mask
        h_scr[...] = jnp.where(m, h_new, h)             # freeze past length
        c_scr[...] = jnp.where(m, c_new, c)
        out_ref[l] = jnp.where(m, h_new, 0.0).astype(out_ref.dtype)
        return carry

    lax.fori_loop(0, time_block, step, 0, unroll=True)

    # Final hidden written once (resident output block, last time block only).
    @pl.when(tb == nt - 1)
    def _():
        hlast_ref[...] = h_scr[...]


def lstm_recurrence_pallas(xw, lengths2d, whh_t, *, reverse, time_block,
                           batch_block):
    """xw: [Tp, Bp, 4Hp] f32 (input projection + bias, precomputed),
       lengths2d: [Bp, 1] int32, whh_t: [Hp, 4Hp] (bf16).
       Returns (out [Tp, Bp, Hp] f32, h_last [Bp, Hp] f32)."""
    Tp, Bp, G4 = xw.shape
    Hp = G4 // 4
    NG = Tp // time_block
    NB = Bp // batch_block

    if reverse:
        t_map = lambda b, g: (NG - 1 - g, b, 0)
    else:
        t_map = lambda b, g: (g, b, 0)

    kernel = functools.partial(_lstm_scan_kernel, time_block=time_block,
                               reverse=reverse, hidden_pad=Hp)

    # VMEM budget (double-buffered pipeline blocks + resident weights/scratch).
    # TODO(synk): constant-index weight blocks could be single-buffered
    # (pipeline_mode=pl.Buffered(1)) to halve resident weight VMEM on v7x.
    itemsize_w = jnp.dtype(whh_t.dtype).itemsize
    est = (2 * time_block * batch_block * G4 * 4        # xw blocks
           + 2 * time_block * batch_block * Hp * 4      # out blocks
           + 2 * batch_block * 128 * 4                  # lengths (lane-padded)
           + 2 * batch_block * Hp * 4                   # h_last
           + 2 * Hp * G4 * itemsize_w                   # W_hh
           + 2 * batch_block * Hp * 4)                  # h/c scratch
    vmem_limit = int(min(max(3 * est, 16 << 20) + (2 << 20), 64 << 20))

    grid_spec = pltpu.PrefetchScalarGridSpec(
        num_scalar_prefetch=0,
        grid=(NB, NG),
        in_specs=[
            pl.BlockSpec((time_block, batch_block, G4), t_map),
            pl.BlockSpec((batch_block, 1), lambda b, g: (b, 0)),
            pl.BlockSpec((Hp, G4), lambda b, g: (0, 0)),
        ],
        out_specs=(
            pl.BlockSpec((time_block, batch_block, Hp), t_map),
            pl.BlockSpec((batch_block, Hp), lambda b, g: (b, 0)),
        ),
        scratch_shapes=[
            pltpu.VMEM((batch_block, Hp), jnp.float32),   # h
            pltpu.VMEM((batch_block, Hp), jnp.float32),   # c
        ],
    )
    return pl.pallas_call(
        kernel,
        out_shape=(jax.ShapeDtypeStruct((Tp, Bp, Hp), jnp.float32),
                   jax.ShapeDtypeStruct((Bp, Hp), jnp.float32)),
        grid_spec=grid_spec,
        compiler_params=pltpu.CompilerParams(
            dimension_semantics=("parallel", "arbitrary"),
            vmem_limit_bytes=vmem_limit),
    )(xw, lengths2d, whh_t)


# --------------------------------------------------------------------------
# Parameter init (same shapes / init law as nn.LSTM: U(-1/sqrt(H), 1/sqrt(H)))
# --------------------------------------------------------------------------
def init_lstm_params(key, input_size, hidden_size, num_layers, bidirectional,
                     bias=True):
    num_dir = 2 if bidirectional else 1
    bound = 1.0 / math.sqrt(hidden_size)
    params = []
    for layer in range(num_layers):
        in_dim = input_size if layer == 0 else hidden_size * num_dir
        dirs = []
        for _ in range(num_dir):
            key, k1, k2, k3, k4 = jax.random.split(key, 5)
            w_ih = jax.random.uniform(k1, (4 * hidden_size, in_dim),
                                      jnp.float32, -bound, bound)
            w_hh = jax.random.uniform(k2, (4 * hidden_size, hidden_size),
                                      jnp.float32, -bound, bound)
            if bias:
                b_ih = jax.random.uniform(k3, (4 * hidden_size,), jnp.float32,
                                          -bound, bound)
                b_hh = jax.random.uniform(k4, (4 * hidden_size,), jnp.float32,
                                          -bound, bound)
            else:
                b_ih = jnp.zeros((4 * hidden_size,), jnp.float32)
                b_hh = jnp.zeros((4 * hidden_size,), jnp.float32)
            dirs.append(dict(w_ih=w_ih, w_hh=w_hh, b_ih=b_ih, b_hh=b_hh))
        params.append(dirs)
    return params


def _prep_dir_params(p, H, Hp, weight_dtype):
    """Transpose + pad PyTorch-layout LSTM weights into lane-aligned gate
    blocks of width Hp (gate k occupies columns [k*Hp, k*Hp+H); padded gate
    columns / W_hh rows are zero, so padded hidden dims stay exactly 0)."""
    w_ih, w_hh = p["w_ih"], p["w_hh"]          # (4H, in_dim), (4H, H)
    b = p["b_ih"] + p["b_hh"]                  # (4H,)
    in_dim = w_ih.shape[1]
    wih_t = jnp.zeros((in_dim, 4 * Hp), jnp.float32)
    whh_t = jnp.zeros((Hp, 4 * Hp), jnp.float32)
    bias = jnp.zeros((4 * Hp,), jnp.float32)
    for k in range(4):
        wih_t = wih_t.at[:, k * Hp:k * Hp + H].set(w_ih[k * H:(k + 1) * H, :].T)
        whh_t = whh_t.at[:H, k * Hp:k * Hp + H].set(w_hh[k * H:(k + 1) * H, :].T)
        bias = bias.at[k * Hp:k * Hp + H].set(b[k * H:(k + 1) * H])
    return wih_t, whh_t.astype(weight_dtype), bias


# --------------------------------------------------------------------------
# Forward wrapper: replicates DynamicLSTM.forward
# --------------------------------------------------------------------------
def dynamic_lstm_forward(x, lengths, params, hidden_size, bidirectional, *,
                         time_block=8, weight_dtype=jnp.bfloat16):
    """x: [B, T, input_size], lengths: [B] int
       returns output [B, T, D*H], hidden_state [B, D*H]."""
    B, T, _ = x.shape
    H = hidden_size
    num_dir = 2 if bidirectional else 1

    # Hardware-aligned padded sizes.
    Hp = _round_up(max(H, 1), 128)          # lane-aligned gate/output width
    Bp = _round_up(max(B, 1), 8)            # sublane-aligned batch
    Tp = _round_up(max(T, 1), time_block)   # whole number of time blocks
    # Split batch across 2 TensorCores (v7x megacore) when it is big enough.
    if Bp >= 16 and Bp % 16 == 0:
        batch_block = Bp // 2
    else:
        batch_block = Bp

    x_tm = jnp.transpose(x.astype(jnp.float32), (1, 0, 2))     # [T, B, I]
    x_tm = jnp.pad(x_tm, ((0, Tp - T), (0, Bp - B), (0, 0)))    # [Tp, Bp, I]
    lengths_p = jnp.pad(lengths.astype(jnp.int32), (0, Bp - B)).reshape(Bp, 1)

    layer_in = x_tm
    hlasts = []
    for dirs in params:
        outs = []
        hlasts = []
        for d, p in enumerate(dirs):
            wih_t, whh_t, bias = _prep_dir_params(p, H, Hp, weight_dtype)
            # Bulk, time-parallel input projection with bias folded in: one
            # big MXU matmul outside the serial recurrence.
            xw = jnp.einsum('tbi,ig->tbg', layer_in, wih_t) + bias
            out_tm, h_last = lstm_recurrence_pallas(
                xw, lengths_p, whh_t, reverse=(d == 1),
                time_block=time_block, batch_block=batch_block)
            outs.append(out_tm[:, :, :H])
            hlasts.append(h_last[:, :H])
        layer_in = jnp.concatenate(outs, axis=-1) if num_dir == 2 else outs[0]
        # TODO(synk): inter-layer dropout not implemented (module uses dropout=0.0)

    output = jnp.transpose(layer_in[:T, :B, :], (1, 0, 2))       # [B, T, D*H]
    hidden = (jnp.concatenate(hlasts, axis=-1)
              if bidirectional else hlasts[0])[:B, :]
    return output, hidden


# --------------------------------------------------------------------------
# Pure-JAX reference (lax.scan, f32) for correctness checking
# --------------------------------------------------------------------------
def _ref_layer(x_tm, mask_tm, p):
    H = p["w_hh"].shape[1]

    def step(carry, inp):
        h, c = carry
        x_t, m_t = inp
        gates = x_t @ p["w_ih"].T + h @ p["w_hh"].T + p["b_ih"] + p["b_hh"]
        i_g = jax.nn.sigmoid(gates[:, 0 * H:1 * H])
        f_g = jax.nn.sigmoid(gates[:, 1 * H:2 * H])
        g_g = jnp.tanh(gates[:, 2 * H:3 * H])
        o_g = jax.nn.sigmoid(gates[:, 3 * H:4 * H])
        c_new = f_g * c + i_g * g_g
        h_new = o_g * jnp.tanh(c_new)
        h2 = m_t * h_new + (1 - m_t) * h
        c2 = m_t * c_new + (1 - m_t) * c
        return (h2, c2), m_t * h_new

    B = x_tm.shape[1]
    (h_fin, _), outs = lax.scan(step,
                                (jnp.zeros((B, H)), jnp.zeros((B, H))),
                                (x_tm, mask_tm))
    return outs, h_fin


def dynamic_lstm_ref(x, lengths, params, hidden_size, bidirectional):
    B, T, _ = x.shape
    num_dir = 2 if bidirectional else 1
    x_tm = jnp.transpose(x.astype(jnp.float32), (1, 0, 2))
    t_idx = jnp.arange(T)
    valid = t_idx[:, None] < lengths[None, :]
    mask_tm = valid.astype(jnp.float32)[:, :, None]
    rev_idx = jnp.where(valid, lengths[None, :] - 1 - t_idx[:, None], 0)

    layer_in = x_tm
    hlasts = []
    for dirs in params:
        outs = []
        hlasts = []
        for d, p in enumerate(dirs):
            xin = layer_in if d == 0 else jnp.take_along_axis(
                layer_in, rev_idx[:, :, None], axis=0)
            out_tm, h_last = _ref_layer(xin, mask_tm, p)
            if d == 1:
                out_tm = jnp.take_along_axis(
                    out_tm, rev_idx[:, :, None], axis=0) * mask_tm
            outs.append(out_tm)
            hlasts.append(h_last)
        layer_in = jnp.concatenate(outs, axis=-1) if num_dir == 2 else outs[0]
    output = jnp.transpose(layer_in, (1, 0, 2))
    hidden = jnp.concatenate(hlasts, axis=-1) if bidirectional else hlasts[0]
    return output, hidden


if __name__ == "__main__":
    # Small config consistent with the module's forward (exercises bidir,
    # multi-layer, zero-length sequences, and T/B/H padding paths).
    B, T, INPUT_SIZE, HIDDEN = 4, 12, 16, 32
    NUM_LAYERS, BIDIRECTIONAL = 2, True

    key = jax.random.PRNGKey(0)
    kx, kp = jax.random.split(key)
    x = jax.random.normal(kx, (B, T, INPUT_SIZE), jnp.float32)
    lengths = jnp.array([5, 12, 0, 9], jnp.int32)   # includes zero-length seq

    params = init_lstm_params(kp, INPUT_SIZE, HIDDEN, NUM_LAYERS, BIDIRECTIONAL)

    out, hid = dynamic_lstm_forward(x, lengths, params, HIDDEN, BIDIRECTIONAL)
    out, hid = jax.block_until_ready(out), jax.block_until_ready(hid)

    out_ref, hid_ref = dynamic_lstm_ref(x, lengths, params, HIDDEN, BIDIRECTIONAL)
    # bf16 recurrent weights (f32 accumulation / f32 h,c) => slightly looser tol
    np.testing.assert_allclose(np.asarray(out), np.asarray(out_ref),
                               rtol=2e-2, atol=2e-2)
    np.testing.assert_allclose(np.asarray(hid), np.asarray(hid_ref),
                               rtol=2e-2, atol=2e-2)

    D = 2 if BIDIRECTIONAL else 1
    assert out.shape == (B, T, HIDDEN * D)
    assert hid.shape == (B, HIDDEN * D)
    print("KERNEL_OK")
</pallas_src>

<mosaic_0001>
module attributes {stable_mosaic.version = 11 : i64} {
  func.func @_lstm_scan_kernel(%arg0: i32, %arg1: i32, %arg2: memref<8x8x512xf32, #tpu.memory_space<vmem>>, %arg3: memref<8x1xi32, #tpu.memory_space<vmem>>, %arg4: memref<128x512xbf16, #tpu.memory_space<vmem>>, %arg5: memref<8x8x128xf32, #tpu.memory_space<vmem>>, %arg6: memref<8x128xf32, #tpu.memory_space<vmem>>, %arg7: memref<8x128xf32, #tpu.memory_space<vmem>>, %arg8: memref<8x128xf32, #tpu.memory_space<vmem>>) attributes {dimension_semantics = [#tpu.dimension_semantics<parallel>, #tpu.dimension_semantics<arbitrary>], iteration_bounds = array<i64: 1, 2>, scalar_prefetch = 0 : i64, scratch_operands = 2 : i64, tpu.core_type = #tpu.core_type<tc>, window_params = [{transform_indices = @transform_0, window_bounds = array<i64: 8, 8, 512>}, {transform_indices = @transform_1, window_bounds = array<i64: 8, 1>}, {pipeline_mode = #tpu.pipeline_mode<synchronous>, transform_indices = @transform_2, window_bounds = array<i64: 128, 512>}, {transform_indices = @transform_3, window_bounds = array<i64: 8, 8, 128>}, {transform_indices = @transform_4, window_bounds = array<i64: 8, 128>}]} {
    %c0_i32 = arith.constant 0 : i32
    %0 = arith.cmpi eq, %arg1, %c0_i32 : i32
    %1 = arith.extui %0 : i1 to i32
    %c0_i32_0 = arith.constant 0 : i32
    %2 = arith.cmpi ne, %1, %c0_i32_0 : i32
    scf.if %2 {
      %cst_143 = arith.constant 0.000000e+00 : f32
      %425 = vector.broadcast %cst_143 : f32 to vector<8x128xf32>
      %c0_144 = arith.constant 0 : index
      %c0_145 = arith.constant 0 : index
      %426 = vector.load %arg7[%c0_144, %c0_145] : memref<8x128xf32, #tpu.memory_space<vmem>>, vector<8x128xf32>
      tpu.vector_store %arg7[%c0_144, %c0_145], %425 {strides = array<i32>} : memref<8x128xf32, #tpu.memory_space<vmem>>, vector<8x128xf32>,
      %cst_146 = arith.constant 0.000000e+00 : f32
      %427 = vector.broadcast %cst_146 : f32 to vector<8x128xf32>
      %c0_147 = arith.constant 0 : index
      %c0_148 = arith.constant 0 : index
      %428 = vector.load %arg8[%c0_147, %c0_148] : memref<8x128xf32, #tpu.memory_space<vmem>>, vector<8x128xf32>
      tpu.vector_store %arg8[%c0_147, %c0_148], %427 {strides = array<i32>} : memref<8x128xf32, #tpu.memory_space<vmem>>, vector<8x128xf32>,
    } else {
    }
    %c0 = arith.constant 0 : index
    %c0_1 = arith.constant 0 : index
    %3 = vector.load %arg3[%c0, %c0_1] : memref<8x1xi32, #tpu.memory_space<vmem>>, vector<8x1xi32>
    %c0_2 = arith.constant 0 : index
    %c0_3 = arith.constant 0 : index
    %4 = vector.load %arg4[%c0_2, %c0_3] : memref<128x512xbf16, #tpu.memory_space<vmem>>, vector<128x512xbf16>
    %c8_i32 = arith.constant 8 : i32
    %5 = arith.muli %arg1, %c8_i32 : i32
    %c0_i32_4 = arith.constant 0 : i32
    %6 = arith.addi %5, %c0_i32_4 : i32
    %c0_5 = arith.constant 0 : index
    %c0_6 = arith.constant 0 : index
    %7 = vector.load %arg7[%c0_5, %c0_6] : memref<8x128xf32, #tpu.memory_space<vmem>>, vector<8x128xf32>
    %c0_7 = arith.constant 0 : index
    %c0_8 = arith.constant 0 : index
    %8 = vector.load %arg8[%c0_7, %c0_8] : memref<8x128xf32, #tpu.memory_space<vmem>>, vector<8x128xf32>
    %9 = arith.index_cast %c0_i32_4 : i32 to index
    %c0_9 = arith.constant 0 : index
    %c0_10 = arith.constant 0 : index
    %10 = vector.load %arg2[%9, %c0_9, %c0_10] : memref<8x8x512xf32, #tpu.memory_space<vmem>>, vector<1x8x512xf32>
    %11 = vector.shape_cast %10 : vector<1x8x512xf32> to vector<8x512xf32>
    %12 = arith.truncf %7 : vector<8x128xf32> to vector<8x128xbf16>
    %cst = arith.constant dense<0.000000e+00> : vector<8x512xf32>
    %13 = tpu.matmul %12, %4, %cst {dimension_numbers = #tpu.dot_dimension_numbers<[1], [0], [0], [1], [0, 0, 1, 1], [], []>} : vector<8x128xbf16>, vector<128x512xbf16>, vector<8x512xf32> -> vector<8x512xf32>
    %14 = arith.addf %11, %13 : vector<8x512xf32>
    %15 = vector.extract_strided_slice %14 {offsets = [0, 0], sizes = [8, 128], strides = [1, 1]} : vector<8x512xf32> to vector<8x128xf32>
    %16 = arith.negf %15 : vector<8x128xf32>
    %17 = math.exp %16 : vector<8x128xf32>
    %cst_11 = arith.constant 1.000000e+00 : f32
    %18 = vector.broadcast %cst_11 : f32 to vector<8x128xf32>
    %19 = arith.addf %18, %17 : vector<8x128xf32>
    %20 = arith.divf %18, %19 : vector<8x128xf32>
    %21 = vector.extract_strided_slice %14 {offsets = [0, 128], sizes = [8, 128], strides = [1, 1]} : vector<8x512xf32> to vector<8x128xf32>
    %22 = arith.negf %21 : vector<8x128xf32>
    %23 = math.exp %22 : vector<8x128xf32>
    %cst_12 = arith.constant 1.000000e+00 : f32
    %24 = vector.broadcast %cst_12 : f32 to vector<8x128xf32>
    %25 = arith.addf %24, %23 : vector<8x128xf32>
    %26 = arith.divf %24, %25 : vector<8x128xf32>
    %27 = vector.extract_strided_slice %14 {offsets = [0, 256], sizes = [8, 128], strides = [1, 1]} : vector<8x512xf32> to vector<8x128xf32>
    %28 = math.tanh %27 : vector<8x128xf32>
    %29 = vector.extract_strided_slice %14 {offsets = [0, 384], sizes = [8, 128], strides = [1, 1]} : vector<8x512xf32> to vector<8x128xf32>
    %30 = arith.negf %29 : vector<8x128xf32>
    %31 = math.exp %30 : vector<8x128xf32>
    %cst_13 = arith.constant 1.000000e+00 : f32
    %32 = vector.broadcast %cst_13 : f32 to vector<8x128xf32>
    %33 = arith.addf %32, %31 : vector<8x128xf32>
    %34 = arith.divf %32, %33 : vector<8x128xf32>
    %35 = arith.mulf %26, %8 : vector<8x128xf32>
    %36 = arith.mulf %20, %28 : vector<8x128xf32>
    %37 = arith.addf %35, %36 : vector<8x128xf32>
    %38 = math.tanh %37 : vector<8x128xf32>
    %39 = arith.mulf %34, %38 : vector<8x128xf32>
    %40 = vector.broadcast %6 : i32 to vector<8x1xi32>
    %41 = arith.cmpi slt, %40, %3 : vector<8x1xi32>
    %42 = vector.shape_cast %41 : vector<8x1xi1> to vector<8x1xi1>
    %43 = vector.broadcast %42 : vector<8x1xi1> to vector<8x128xi1>
    %44 = arith.select %43, %39, %7 : vector<8x128xi1>, vector<8x128xf32>
    %c0_14 = arith.constant 0 : index
    %c0_15 = arith.constant 0 : index
    %45 = vector.load %arg7[%c0_14, %c0_15] : memref<8x128xf32, #tpu.memory_space<vmem>>, vector<8x128xf32>
    tpu.vector_store %arg7[%c0_14, %c0_15], %44 {strides = array<i32>} : memref<8x128xf32, #tpu.memory_space<vmem>>, vector<8x128xf32>,
    %46 = vector.shape_cast %41 : vector<8x1xi1> to vector<8x1xi1>
    %47 = vector.broadcast %46 : vector<8x1xi1> to vector<8x128xi1>
    %48 = arith.select %47, %37, %8 : vector<8x128xi1>, vector<8x128xf32>
    %c0_16 = arith.constant 0 : index
    %c0_17 = arith.constant 0 : index
    %49 = vector.load %arg8[%c0_16, %c0_17] : memref<8x128xf32, #tpu.memory_space<vmem>>, vector<8x128xf32>
    tpu.vector_store %arg8[%c0_16, %c0_17], %48 {strides = array<i32>} : memref<8x128xf32, #tpu.memory_space<vmem>>, vector<8x128xf32>,
    %cst_18 = arith.constant 0.000000e+00 : f32
    %50 = vector.shape_cast %41 : vector<8x1xi1> to vector<8x1xi1>
    %51 = vector.broadcast %50 : vector<8x1xi1> to vector<8x128xi1>
    %52 = vector.broadcast %cst_18 : f32 to vector<8x128xf32>
    %53 = arith.select %51, %39, %52 : vector<8x128xi1>, vector<8x128xf32>
    %54 = arith.index_cast %c0_i32_4 : i32 to index
    %c0_19 = arith.constant 0 : index
    %c0_20 = arith.constant 0 : index
    %55 = vector.load %arg5[%54, %c0_19, %c0_20] : memref<8x8x128xf32, #tpu.memory_space<vmem>>, vector<1x8x128xf32>
    %56 = vector.shape_cast %55 : vector<1x8x128xf32> to vector<8x128xf32>
    %57 = vector.shape_cast %53 : vector<8x128xf32> to vector<1x8x128xf32>
    tpu.vector_store %arg5[%54, %c0_19, %c0_20], %57 {strides = array<i32>} : memref<8x8x128xf32, #tpu.memory_space<vmem>>, vector<1x8x128xf32>,
    %c1_i32 = arith.constant 1 : i32
    %58 = arith.addi %5, %c1_i32 : i32
    %c0_21 = arith.constant 0 : index
    %c0_22 = arith.constant 0 : index
    %59 = vector.load %arg7[%c0_21, %c0_22] : memref<8x128xf32, #tpu.memory_space<vmem>>, vector<8x128xf32>
    %c0_23 = arith.constant 0 : index
    %c0_24 = arith.constant 0 : index
    %60 = vector.load %arg8[%c0_23, %c0_24] : memref<8x128xf32, #tpu.memory_space<vmem>>, vector<8x128xf32>
    %61 = arith.index_cast %c1_i32 : i32 to index
    %c0_25 = arith.constant 0 : index
    %c0_26 = arith.constant 0 : index
    %62 = vector.load %arg2[%61, %c0_25, %c0_26] : memref<8x8x512xf32, #tpu.memory_space<vmem>>, vector<1x8x512xf32>
    %63 = vector.shape_cast %62 : vector<1x8x512xf32> to vector<8x512xf32>
    %64 = arith.truncf %59 : vector<8x128xf32> to vector<8x128xbf16>
    %cst_27 = arith.constant dense<0.000000e+00> : vector<8x512xf32>
    %65 = tpu.matmul %64, %4, %cst_27 {dimension_numbers = #tpu.dot_dimension_numbers<[1], [0], [0], [1], [0, 0, 1, 1], [], []>} : vector<8x128xbf16>, vector<128x512xbf16>, vector<8x512xf32> -> vector<8x512xf32>
    %66 = arith.addf %63, %65 : vector<8x512xf32>
    %67 = vector.extract_strided_slice %66 {offsets = [0, 0], sizes = [8, 128], strides = [1, 1]} : vector<8x512xf32> to vector<8x128xf32>
    %68 = arith.negf %67 : vector<8x128xf32>
    %69 = math.exp %68 : vector<8x128xf32>
    %cst_28 = arith.constant 1.000000e+00 : f32
    %70 = vector.broadcast %cst_28 : f32 to vector<8x128xf32>
    %71 = arith.addf %70, %69 : vector<8x128xf32>
    %72 = arith.divf %70, %71 : vector<8x128xf32>
    %73 = vector.extract_strided_slice %66 {offsets = [0, 128], sizes = [8, 128], strides = [1, 1]} : vector<8x512xf32> to vector<8x128xf32>
    %74 = arith.negf %73 : vector<8x128xf32>
    %75 = math.exp %74 : vector<8x128xf32>
    %cst_29 = arith.constant 1.000000e+00 : f32
    %76 = vector.broadcast %cst_29 : f32 to vector<8x128xf32>
    %77 = arith.addf %76, %75 : vector<8x128xf32>
    %78 = arith.divf %76, %77 : vector<8x128xf32>
    %79 = vector.extract_strided_slice %66 {offsets = [0, 256], sizes = [8, 128], strides = [1, 1]} : vector<8x512xf32> to vector<8x128xf32>
    %80 = math.tanh %79 : vector<8x128xf32>
    %81 = vector.extract_strided_slice %66 {offsets = [0, 384], sizes = [8, 128], strides = [1, 1]} : vector<8x512xf32> to vector<8x128xf32>
    %82 = arith.negf %81 : vector<8x128xf32>
    %83 = math.exp %82 : vector<8x128xf32>
    %cst_30 = arith.constant 1.000000e+00 : f32
    %84 = vector.broadcast %cst_30 : f32 to vector<8x128xf32>
    %85 = arith.addf %84, %83 : vector<8x128xf32>
    %86 = arith.divf %84, %85 : vector<8x128xf32>
    %87 = arith.mulf %78, %60 : vector<8x128xf32>
    %88 = arith.mulf %72, %80 : vector<8x128xf32>
    %89 = arith.addf %87, %88 : vector<8x128xf32>
    %90 = math.tanh %89 : vector<8x128xf32>
    %91 = arith.mulf %86, %90 : vector<8x128xf32>
    %92 = vector.broadcast %58 : i32 to vector<8x1xi32>
    %93 = arith.cmpi slt, %92, %3 : vector<8x1xi32>
    %94 = vector.shape_cast %93 : vector<8x1xi1> to vector<8x1xi1>
    %95 = vector.broadcast %94 : vector<8x1xi1> to vector<8x128xi1>
    %96 = arith.select %95, %91, %59 : vector<8x128xi1>, vector<8x128xf32>
    %c0_31 = arith.constant 0 : index
    %c0_32 = arith.constant 0 : index
    %97 = vector.load %arg7[%c0_31, %c0_32] : memref<8x128xf32, #tpu.memory_space<vmem>>, vector<8x128xf32>
    tpu.vector_store %arg7[%c0_31, %c0_32], %96 {strides = array<i32>} : memref<8x128xf32, #tpu.memory_space<vmem>>, vector<8x128xf32>,
    %98 = vector.shape_cast %93 : vector<8x1xi1> to vector<8x1xi1>
    %99 = vector.broadcast %98 : vector<8x1xi1> to vector<8x128xi1>
    %100 = arith.select %99, %89, %60 : vector<8x128xi1>, vector<8x128xf32>
    %c0_33 = arith.constant 0 : index
    %c0_34 = arith.constant 0 : index
    %101 = vector.load %arg8[%c0_33, %c0_34] : memref<8x128xf32, #tpu.memory_space<vmem>>, vector<8x128xf32>
    tpu.vector_store %arg8[%c0_33, %c0_34], %100 {strides = array<i32>} : memref<8x128xf32, #tpu.memory_space<vmem>>, vector<8x128xf32>,
    %cst_35 = arith.constant 0.000000e+00 : f32
    %102 = vector.shape_cast %93 : vector<8x1xi1> to vector<8x1xi1>
    %103 = vector.broadcast %102 : vector<8x1xi1> to vector<8x128xi1>
    %104 = vector.broadcast %cst_35 : f32 to vector<8x128xf32>
    %105 = arith.select %103, %91, %104 : vector<8x128xi1>, vector<8x128xf32>
    %106 = arith.index_cast %c1_i32 : i32 to index
    %c0_36 = arith.constant 0 : index
    %c0_37 = arith.constant 0 : index
    %107 = vector.load %arg5[%106, %c0_36, %c0_37] : memref<8x8x128xf32, #tpu.memory_space<vmem>>, vector<1x8x128xf32>
    %108 = vector.shape_cast %107 : vector<1x8x128xf32> to vector<8x128xf32>
    %109 = vector.shape_cast %105 : vector<8x128xf32> to vector<1x8x128xf32>
    tpu.vector_store %arg5[%106, %c0_36, %c0_37], %109 {strides = array<i32>} : memref<8x8x128xf32, #tpu.memory_space<vmem>>, vector<1x8x128xf32>,
    %c2_i32 = arith.constant 2 : i32
    %110 = arith.addi %5, %c2_i32 : i32
    %c0_38 = arith.constant 0 : index
    %c0_39 = arith.constant 0 : index
    %111 = vector.load %arg7[%c0_38, %c0_39] : memref<8x128xf32, #tpu.memory_space<vmem>>, vector<8x128xf32>
    %c0_40 = arith.constant 0 : index
    %c0_41 = arith.constant 0 : index
    %112 = vector.load %arg8[%c0_40, %c0_41] : memref<8x128xf32, #tpu.memory_space<vmem>>, vector<8x128xf32>
    %113 = arith.index_cast %c2_i32 : i32 to index
    %c0_42 = arith.constant 0 : index
    %c0_43 = arith.constant 0 : index
    %114 = vector.load %arg2[%113, %c0_42, %c0_43] : memref<8x8x512xf32, #tpu.memory_space<vmem>>, vector<1x8x512xf32>
    %115 = vector.shape_cast %114 : vector<1x8x512xf32> to vector<8x512xf32>
    %116 = arith.truncf %111 : vector<8x128xf32> to vector<8x128xbf16>
    %cst_44 = arith.constant dense<0.000000e+00> : vector<8x512xf32>
    %117 = tpu.matmul %116, %4, %cst_44 {dimension_numbers = #tpu.dot_dimension_numbers<[1], [0], [0], [1], [0, 0, 1, 1], [], []>} : vector<8x128xbf16>, vector<128x512xbf16>, vector<8x512xf32> -> vector<8x512xf32>
    %118 = arith.addf %115, %117 : vector<8x512xf32>
    %119 = vector.extract_strided_slice %118 {offsets = [0, 0], sizes = [8, 128], strides = [1, 1]} : vector<8x512xf32> to vector<8x128xf32>
    %120 = arith.negf %119 : vector<8x128xf32>
    %121 = math.exp %120 : vector<8x128xf32>
    %cst_45 = arith.constant 1.000000e+00 : f32
    %122 = vector.broadcast %cst_45 : f32 to vector<8x128xf32>
    %123 = arith.addf %122, %121 : vector<8x128xf32>
    %124 = arith.divf %122, %123 : vector<8x128xf32>
    %125 = vector.extract_strided_slice %118 {offsets = [0, 128], sizes = [8, 128], strides = [1, 1]} : vector<8x512xf32> to vector<8x128xf32>
    %126 = arith.negf %125 : vector<8x128xf32>
    %127 = math.exp %126 : vector<8x128xf32>
    %cst_46 = arith.constant 1.000000e+00 : f32
    %128 = vector.broadcast %cst_46 : f32 to vector<8x128xf32>
    %129 = arith.addf %128, %127 : vector<8x128xf32>
    %130 = arith.divf %128, %129 : vector<8x128xf32>
    %131 = vector.extract_strided_slice %118 {offsets = [0, 256], sizes = [8, 128], strides = [1, 1]} : vector<8x512xf32> to vector<8x128xf32>
    %132 = math.tanh %131 : vector<8x128xf32>
    %133 = vector.extract_strided_slice %118 {offsets = [0, 384], sizes = [8, 128], strides = [1, 1]} : vector<8x512xf32> to vector<8x128xf32>
    %134 = arith.negf %133 : vector<8x128xf32>
    %135 = math.exp %134 : vector<8x128xf32>
    %cst_47 = arith.constant 1.000000e+00 : f32
    %136 = vector.broadcast %cst_47 : f32 to vector<8x128xf32>
    %137 = arith.addf %136, %135 : vector<8x128xf32>
    %138 = arith.divf %136, %137 : vector<8x128xf32>
    %139 = arith.mulf %130, %112 : vector<8x128xf32>
    %140 = arith.mulf %124, %132 : vector<8x128xf32>
    %141 = arith.addf %139, %140 : vector<8x128xf32>
    %142 = math.tanh %141 : vector<8x128xf32>
    %143 = arith.mulf %138, %142 : vector<8x128xf32>
    %144 = vector.broadcast %110 : i32 to vector<8x1xi32>
    %145 = arith.cmpi slt, %144, %3 : vector<8x1xi32>
    %146 = vector.shape_cast %145 : vector<8x1xi1> to vector<8x1xi1>
    %147 = vector.broadcast %146 : vector<8x1xi1> to vector<8x128xi1>
    %148 = arith.select %147, %143, %111 : vector<8x128xi1>, vector<8x128xf32>
    %c0_48 = arith.constant 0 : index
    %c0_49 = arith.constant 0 : index
    %149 = vector.load %arg7[%c0_48, %c0_49] : memref<8x128xf32, #tpu.memory_space<vmem>>, vector<8x128xf32>
    tpu.vector_store %arg7[%c0_48, %c0_49], %148 {strides = array<i32>} : memref<8x128xf32, #tpu.memory_space<vmem>>, vector<8x128xf32>,
    %150 = vector.shape_cast %145 : vector<8x1xi1> to vector<8x1xi1>
    %151 = vector.broadcast %150 : vector<8x1xi1> to vector<8x128xi1>
    %152 = arith.select %151, %141, %112 : vector<8x128xi1>, vector<8x128xf32>
    %c0_50 = arith.constant 0 : index
    %c0_51 = arith.constant 0 : index
    %153 = vector.load %arg8[%c0_50, %c0_51] : memref<8x128xf32, #tpu.memory_space<vmem>>, vector<8x128xf32>
    tpu.vector_store %arg8[%c0_50, %c0_51], %152 {strides = array<i32>} : memref<8x128xf32, #tpu.memory_space<vmem>>, vector<8x128xf32>,
    %cst_52 = arith.constant 0.000000e+00 : f32
    %154 = vector.shape_cast %145 : vector<8x1xi1> to vector<8x1xi1>
    %155 = vector.broadcast %154 : vector<8x1xi1> to vector<8x128xi1>
    %156 = vector.broadcast %cst_52 : f32 to vector<8x128xf32>
    %157 = arith.select %155, %143, %156 : vector<8x128xi1>, vector<8x128xf32>
    %158 = arith.index_cast %c2_i32 : i32 to index
    %c0_53 = arith.constant 0 : index
    %c0_54 = arith.constant 0 : index
    %159 = vector.load %arg5[%158, %c0_53, %c0_54] : memref<8x8x128xf32, #tpu.memory_space<vmem>>, vector<1x8x128xf32>
    %160 = vector.shape_cast %159 : vector<1x8x128xf32> to vector<8x128xf32>
    %161 = vector.shape_cast %157 : vector<8x128xf32> to vector<1x8x128xf32>
    tpu.vector_store %arg5[%158, %c0_53, %c0_54], %161 {strides = array<i32>} : memref<8x8x128xf32, #tpu.memory_space<vmem>>, vector<1x8x128xf32>,
    %c3_i32 = arith.constant 3 : i32
    %162 = arith.addi %5, %c3_i32 : i32
    %c0_55 = arith.constant 0 : index
    %c0_56 = arith.constant 0 : index
    %163 = vector.load %arg7[%c0_55, %c0_56] : memref<8x128xf32, #tpu.memory_space<vmem>>, vector<8x128xf32>
    %c0_57 = arith.constant 0 : index
    %c0_58 = arith.constant 0 : index
    %164 = vector.load %arg8[%c0_57, %c0_58] : memref<8x128xf32, #tpu.memory_space<vmem>>, vector<8x128xf32>
    %165 = arith.index_cast %c3_i32 : i32 to index
    %c0_59 = arith.constant 0 : index
    %c0_60 = arith.constant 0 : index
    %166 = vector.load %arg2[%165, %c0_59, %c0_60] : memref<8x8x512xf32, #tpu.memory_space<vmem>>, vector<1x8x512xf32>
    %167 = vector.shape_cast %166 : vector<1x8x512xf32> to vector<8x512xf32>
    %168 = arith.truncf %163 : vector<8x128xf32> to vector<8x128xbf16>
    %cst_61 = arith.constant dense<0.000000e+00> : vector<8x512xf32>
    %169 = tpu.matmul %168, %4, %cst_61 {dimension_numbers = #tpu.dot_dimension_numbers<[1], [0], [0], [1], [0, 0, 1, 1], [], []>} : vector<8x128xbf16>, vector<128x512xbf16>, vector<8x512xf32> -> vector<8x512xf32>
    %170 = arith.addf %167, %169 : vector<8x512xf32>
    %171 = vector.extract_strided_slice %170 {offsets = [0, 0], sizes = [8, 128], strides = [1, 1]} : vector<8x512xf32> to vector<8x128xf32>
    %172 = arith.negf %171 : vector<8x128xf32>
    %173 = math.exp %172 : vector<8x128xf32>
    %cst_62 = arith.constant 1.000000e+00 : f32
    %174 = vector.broadcast %cst_62 : f32 to vector<8x128xf32>
    %175 = arith.addf %174, %173 : vector<8x128xf32>
    %176 = arith.divf %174, %175 : vector<8x128xf32>
    %177 = vector.extract_strided_slice %170 {offsets = [0, 128], sizes = [8, 128], strides = [1, 1]} : vector<8x512xf32> to vector<8x128xf32>
    %178 = arith.negf %177 : vector<8x128xf32>
    %179 = math.exp %178 : vector<8x128xf32>
    %cst_63 = arith.constant 1.000000e+00 : f32
    %180 = vector.broadcast %cst_63 : f32 to vector<8x128xf32>
    %181 = arith.addf %180, %179 : vector<8x128xf32>
    %182 = arith.divf %180, %181 : vector<8x128xf32>
    %183 = vector.extract_strided_slice %170 {offsets = [0, 256], sizes = [8, 128], strides = [1, 1]} : vector<8x512xf32> to vector<8x128xf32>
    %184 = math.tanh %183 : vector<8x128xf32>
    %185 = vector.extract_strided_slice %170 {offsets = [0, 384], sizes = [8, 128], strides = [1, 1]} : vector<8x512xf32> to vector<8x128xf32>
    %186 = arith.negf %185 : vector<8x128xf32>
    %187 = math.exp %186 : vector<8x128xf32>
    %cst_64 = arith.constant 1.000000e+00 : f32
    %188 = vector.broadcast %cst_64 : f32 to vector<8x128xf32>
    %189 = arith.addf %188, %187 : vector<8x128xf32>
    %190 = arith.divf %188, %189 : vector<8x128xf32>
    %191 = arith.mulf %182, %164 : vector<8x128xf32>
    %192 = arith.mulf %176, %184 : vector<8x128xf32>
    %193 = arith.addf %191, %192 : vector<8x128xf32>
    %194 = math.tanh %193 : vector<8x128xf32>
    %195 = arith.mulf %190, %194 : vector<8x128xf32>
    %196 = vector.broadcast %162 : i32 to vector<8x1xi32>
    %197 = arith.cmpi slt, %196, %3 : vector<8x1xi32>
    %198 = vector.shape_cast %197 : vector<8x1xi1> to vector<8x1xi1>
    %199 = vector.broadcast %198 : vector<8x1xi1> to vector<8x128xi1>
    %200 = arith.select %199, %195, %163 : vector<8x128xi1>, vector<8x128xf32>
    %c0_65 = arith.constant 0 : index
    %c0_66 = arith.constant 0 : index
    %201 = vector.load %arg7[%c0_65, %c0_66] : memref<8x128xf32, #tpu.memory_space<vmem>>, vector<8x128xf32>
    tpu.vector_store %arg7[%c0_65, %c0_66], %200 {strides = array<i32>} : memref<8x128xf32, #tpu.memory_space<vmem>>, vector<8x128xf32>,
    %202 = vector.shape_cast %197 : vector<8x1xi1> to vector<8x1xi1>
    %203 = vector.broadcast %202 : vector<8x1xi1> to vector<8x128xi1>
    %204 = arith.select %203, %193, %164 : vector<8x128xi1>, vector<8x128xf32>
    %c0_67 = arith.constant 0 : index
    %c0_68 = arith.constant 0 : index
    %205 = vector.load %arg8[%c0_67, %c0_68] : memref<8x128xf32, #tpu.memory_space<vmem>>, vector<8x128xf32>
    tpu.vector_store %arg8[%c0_67, %c0_68], %204 {strides = array<i32>} : memref<8x128xf32, #tpu.memory_space<vmem>>, vector<8x128xf32>,
    %cst_69 = arith.constant 0.000000e+00 : f32
    %206 = vector.shape_cast %197 : vector<8x1xi1> to vector<8x1xi1>
    %207 = vector.broadcast %206 : vector<8x1xi1> to vector<8x128xi1>
    %208 = vector.broadcast %cst_69 : f32 to vector<8x128xf32>
    %209 = arith.select %207, %195, %208 : vector<8x128xi1>, vector<8x128xf32>
    %210 = arith.index_cast %c3_i32 : i32 to index
    %c0_70 = arith.constant 0 : index
    %c0_71 = arith.constant 0 : index
    %211 = vector.load %arg5[%210, %c0_70, %c0_71] : memref<8x8x128xf32, #tpu.memory_space<vmem>>, vector<1x8x128xf32>
    %212 = vector.shape_cast %211 : vector<1x8x128xf32> to vector<8x128xf32>
    %213 = vector.shape_cast %209 : vector<8x128xf32> to vector<1x8x128xf32>
    tpu.vector_store %arg5[%210, %c0_70, %c0_71], %213 {strides = array<i32>} : memref<8x8x128xf32, #tpu.memory_space<vmem>>, vector<1x8x128xf32>,
    %c4_i32 = arith.constant 4 : i32
    %214 = arith.addi %5, %c4_i32 : i32
    %c0_72 = arith.constant 0 : index
    %c0_73 = arith.constant 0 : index
    %215 = vector.load %arg7[%c0_72, %c0_73] : memref<8x128xf32, #tpu.memory_space<vmem>>, vector<8x128xf32>
    %c0_74 = arith.constant 0 : index
    %c0_75 = arith.constant 0 : index
    %216 = vector.load %arg8[%c0_74, %c0_75] : memref<8x128xf32, #tpu.memory_space<vmem>>, vector<8x128xf32>
    %217 = arith.index_cast %c4_i32 : i32 to index
    %c0_76 = arith.constant 0 : index
    %c0_77 = arith.constant 0 : index
    %218 = vector.load %arg2[%217, %c0_76, %c0_77] : memref<8x8x512xf32, #tpu.memory_space<vmem>>, vector<1x8x512xf32>
    %219 = vector.shape_cast %218 : vector<1x8x512xf32> to vector<8x512xf32>
    %220 = arith.truncf %215 : vector<8x128xf32> to vector<8x128xbf16>
    %cst_78 = arith.constant dense<0.000000e+00> : vector<8x512xf32>
    %221 = tpu.matmul %220, %4, %cst_78 {dimension_numbers = #tpu.dot_dimension_numbers<[1], [0], [0], [1], [0, 0, 1, 1], [], []>} : vector<8x128xbf16>, vector<128x512xbf16>, vector<8x512xf32> -> vector<8x512xf32>
    %222 = arith.addf %219, %221 : vector<8x512xf32>
    %223 = vector.extract_strided_slice %222 {offsets = [0, 0], sizes = [8, 128], strides = [1, 1]} : vector<8x512xf32> to vector<8x128xf32>
    %224 = arith.negf %223 : vector<8x128xf32>
    %225 = math.exp %224 : vector<8x128xf32>
    %cst_79 = arith.constant 1.000000e+00 : f32
    %226 = vector.broadcast %cst_79 : f32 to vector<8x128xf32>
    %227 = arith.addf %226, %225 : vector<8x128xf32>
    %228 = arith.divf %226, %227 : vector<8x128xf32>
    %229 = vector.extract_strided_slice %222 {offsets = [0, 128], sizes = [8, 128], strides = [1, 1]} : vector<8x512xf32> to vector<8x128xf32>
    %230 = arith.negf %229 : vector<8x128xf32>
    %231 = math.exp %230 : vector<8x128xf32>
    %cst_80 = arith.constant 1.000000e+00 : f32
    %232 = vector.broadcast %cst_80 : f32 to vector<8x128xf32>
    %233 = arith.addf %232, %231 : vector<8x128xf32>
    %234 = arith.divf %232, %233 : vector<8x128xf32>
    %235 = vector.extract_strided_slice %222 {offsets = [0, 256], sizes = [8, 128], strides = [1, 1]} : vector<8x512xf32> to vector<8x128xf32>
    %236 = math.tanh %235 : vector<8x128xf32>
    %237 = vector.extract_strided_slice %222 {offsets = [0, 384], sizes = [8, 128], strides = [1, 1]} : vector<8x512xf32> to vector<8x128xf32>
    %238 = arith.negf %237 : vector<8x128xf32>
    %239 = math.exp %238 : vector<8x128xf32>
    %cst_81 = arith.constant 1.000000e+00 : f32
    %240 = vector.broadcast %cst_81 : f32 to vector<8x128xf32>
    %241 = arith.addf %240, %239 : vector<8x128xf32>
    %242 = arith.divf %240, %241 : vector<8x128xf32>
    %243 = arith.mulf %234, %216 : vector<8x128xf32>
    %244 = arith.mulf %228, %236 : vector<8x128xf32>
    %245 = arith.addf %243, %244 : vector<8x128xf32>
    %246 = math.tanh %245 : vector<8x128xf32>
    %247 = arith.mulf %242, %246 : vector<8x128xf32>
    %248 = vector.broadcast %214 : i32 to vector<8x1xi32>
    %249 = arith.cmpi slt, %248, %3 : vector<8x1xi32>
    %250 = vector.shape_cast %249 : vector<8x1xi1> to vector<8x1xi1>
    %251 = vector.broadcast %250 : vector<8x1xi1> to vector<8x128xi1>
    %252 = arith.select %251, %247, %215 : vector<8x128xi1>, vector<8x128xf32>
    %c0_82 = arith.constant 0 : index
    %c0_83 = arith.constant 0 : index
    %253 = vector.load %arg7[%c0_82, %c0_83] : memref<8x128xf32, #tpu.memory_space<vmem>>, vector<8x128xf32>
    tpu.vector_store %arg7[%c0_82, %c0_83], %252 {strides = array<i32>} : memref<8x128xf32, #tpu.memory_space<vmem>>, vector<8x128xf32>,
    %254 = vector.shape_cast %249 : vector<8x1xi1> to vector<8x1xi1>
    %255 = vector.broadcast %254 : vector<8x1xi1> to vector<8x128xi1>
    %256 = arith.select %255, %245, %216 : vector<8x128xi1>, vector<8x128xf32>
    %c0_84 = arith.constant 0 : index
    %c0_85 = arith.constant 0 : index
    %257 = vector.load %arg8[%c0_84, %c0_85] : memref<8x128xf32, #tpu.memory_space<vmem>>, vector<8x128xf32>
    tpu.vector_store %arg8[%c0_84, %c0_85], %256 {strides = array<i32>} : memref<8x128xf32, #tpu.memory_space<vmem>>, vector<8x128xf32>,
    %cst_86 = arith.constant 0.000000e+00 : f32
    %258 = vector.shape_cast %249 : vector<8x1xi1> to vector<8x1xi1>
    %259 = vector.broadcast %258 : vector<8x1xi1> to vector<8x128xi1>
    %260 = vector.broadcast %cst_86 : f32 to vector<8x128xf32>
    %261 = arith.select %259, %247, %260 : vector<8x128xi1>, vector<8x128xf32>
    %262 = arith.index_cast %c4_i32 : i32 to index
    %c0_87 = arith.constant 0 : index
    %c0_88 = arith.constant 0 : index
    %263 = vector.load %arg5[%262, %c0_87, %c0_88] : memref<8x8x128xf32, #tpu.memory_space<vmem>>, vector<1x8x128xf32>
    %264 = vector.shape_cast %263 : vector<1x8x128xf32> to vector<8x128xf32>
    %265 = vector.shape_cast %261 : vector<8x128xf32> to vector<1x8x128xf32>
    tpu.vector_store %arg5[%262, %c0_87, %c0_88], %265 {strides = array<i32>} : memref<8x8x128xf32, #tpu.memory_space<vmem>>, vector<1x8x128xf32>,
    %c5_i32 = arith.constant 5 : i32
    %266 = arith.addi %5, %c5_i32 : i32
    %c0_89 = arith.constant 0 : index
    %c0_90 = arith.constant 0 : index
    %267 = vector.load %arg7[%c0_89, %c0_90] : memref<8x128xf32, #tpu.memory_space<vmem>>, vector<8x128xf32>
    %c0_91 = arith.constant 0 : index
    %c0_92 = arith.constant 0 : index
    %268 = vector.load %arg8[%c0_91, %c0_92] : memref<8x128xf32, #tpu.memory_space<vmem>>, vector<8x128xf32>
    %269 = arith.index_cast %c5_i32 : i32 to index
    %c0_93 = arith.constant 0 : index
    %c0_94 = arith.constant 0 : index
    %270 = vector.load %arg2[%269, %c0_93, %c0_94] : memref<8x8x512xf32, #tpu.memory_space<vmem>>, vector<1x8x512xf32>
    %271 = vector.shape_cast %270 : vector<1x8x512xf32> to vector<8x512xf32>
    %272 = arith.truncf %267 : vector<8x128xf32> to vector<8x128xbf16>
    %cst_95 = arith.constant dense<0.000000e+00> : vector<8x512xf32>
    %273 = tpu.matmul %272, %4, %cst_95 {dimension_numbers = #tpu.dot_dimension_numbers<[1], [0], [0], [1], [0, 0, 1, 1], [], []>} : vector<8x128xbf16>, vector<128x512xbf16>, vector<8x512xf32> -> vector<8x512xf32>
    %274 = arith.addf %271, %273 : vector<8x512xf32>
    %275 = vector.extract_strided_slice %274 {offsets = [0, 0], sizes = [8, 128], strides = [1, 1]} : vector<8x512xf32> to vector<8x128xf32>
    %276 = arith.negf %275 : vector<8x128xf32>
    %277 = math.exp %276 : vector<8x128xf32>
    %cst_96 = arith.constant 1.000000e+00 : f32
    %278 = vector.broadcast %cst_96 : f32 to vector<8x128xf32>
    %279 = arith.addf %278, %277 : vector<8x128xf32>
    %280 = arith.divf %278, %279 : vector<8x128xf32>
    %281 = vector.extract_strided_slice %274 {offsets = [0, 128], sizes = [8, 128], strides = [1, 1]} : vector<8x512xf32> to vector<8x128xf32>
    %282 = arith.negf %281 : vector<8x128xf32>
    %283 = math.exp %282 : vector<8x128xf32>
    %cst_97 = arith.constant 1.000000e+00 : f32
    %284 = vector.broadcast %cst_97 : f32 to vector<8x128xf32>
    %285 = arith.addf %284, %283 : vector<8x128xf32>
    %286 = arith.divf %284, %285 : vector<8x128xf32>
    %287 = vector.extract_strided_slice %274 {offsets = [0, 256], sizes = [8, 128], strides = [1, 1]} : vector<8x512xf32> to vector<8x128xf32>
    %288 = math.tanh %287 : vector<8x128xf32>
    %289 = vector.extract_strided_slice %274 {offsets = [0, 384], sizes = [8, 128], strides = [1, 1]} : vector<8x512xf32> to vector<8x128xf32>
    %290 = arith.negf %289 : vector<8x128xf32>
    %291 = math.exp %290 : vector<8x128xf32>
    %cst_98 = arith.constant 1.000000e+00 : f32
    %292 = vector.broadcast %cst_98 : f32 to vector<8x128xf32>
    %293 = arith.addf %292, %291 : vector<8x128xf32>
    %294 = arith.divf %292, %293 : vector<8x128xf32>
    %295 = arith.mulf %286, %268 : vector<8x128xf32>
    %296 = arith.mulf %280, %288 : vector<8x128xf32>
    %297 = arith.addf %295, %296 : vector<8x128xf32>
    %298 = math.tanh %297 : vector<8x128xf32>
    %299 = arith.mulf %294, %298 : vector<8x128xf32>
    %300 = vector.broadcast %266 : i32 to vector<8x1xi32>
    %301 = arith.cmpi slt, %300, %3 : vector<8x1xi32>
    %302 = vector.shape_cast %301 : vector<8x1xi1> to vector<8x1xi1>
    %303 = vector.broadcast %302 : vector<8x1xi1> to vector<8x128xi1>
    %304 = arith.select %303, %299, %267 : vector<8x128xi1>, vector<8x128xf32>
    %c0_99 = arith.constant 0 : index
    %c0_100 = arith.constant 0 : index
    %305 = vector.load %arg7[%c0_99, %c0_100] : memref<8x128xf32, #tpu.memory_space<vmem>>, vector<8x128xf32>
    tpu.vector_store %arg7[%c0_99, %c0_100], %304 {strides = array<i32>} : memref<8x128xf32, #tpu.memory_space<vmem>>, vector<8x128xf32>,
    %306 = vector.shape_cast %301 : vector<8x1xi1> to vector<8x1xi1>
    %307 = vector.broadcast %306 : vector<8x1xi1> to vector<8x128xi1>
    %308 = arith.select %307, %297, %268 : vector<8x128xi1>, vector<8x128xf32>
    %c0_101 = arith.constant 0 : index
    %c0_102 = arith.constant 0 : index
    %309 = vector.load %arg8[%c0_101, %c0_102] : memref<8x128xf32, #tpu.memory_space<vmem>>, vector<8x128xf32>
    tpu.vector_store %arg8[%c0_101, %c0_102], %308 {strides = array<i32>} : memref<8x128xf32, #tpu.memory_space<vmem>>, vector<8x128xf32>,
    %cst_103 = arith.constant 0.000000e+00 : f32
    %310 = vector.shape_cast %301 : vector<8x1xi1> to vector<8x1xi1>
    %311 = vector.broadcast %310 : vector<8x1xi1> to vector<8x128xi1>
    %312 = vector.broadcast %cst_103 : f32 to vector<8x128xf32>
    %313 = arith.select %311, %299, %312 : vector<8x128xi1>, vector<8x128xf32>
    %314 = arith.index_cast %c5_i32 : i32 to index
    %c0_104 = arith.constant 0 : index
    %c0_105 = arith.constant 0 : index
    %315 = vector.load %arg5[%314, %c0_104, %c0_105] : memref<8x8x128xf32, #tpu.memory_space<vmem>>, vector<1x8x128xf32>
    %316 = vector.shape_cast %315 : vector<1x8x128xf32> to vector<8x128xf32>
    %317 = vector.shape_cast %313 : vector<8x128xf32> to vector<1x8x128xf32>
    tpu.vector_store %arg5[%314, %c0_104, %c0_105], %317 {strides = array<i32>} : memref<8x8x128xf32, #tpu.memory_space<vmem>>, vector<1x8x128xf32>,
    %c6_i32 = arith.constant 6 : i32
    %318 = arith.addi %5, %c6_i32 : i32
    %c0_106 = arith.constant 0 : index
    %c0_107 = arith.constant 0 : index
    %319 = vector.load %arg7[%c0_106, %c0_107] : memref<8x128xf32, #tpu.memory_space<vmem>>, vector<8x128xf32>
    %c0_108 = arith.constant 0 : index
    %c0_109 = arith.constant 0 : index
    %320 = vector.load %arg8[%c0_108, %c0_109] : memref<8x128xf32, #tpu.memory_space<vmem>>, vector<8x128xf32>
    %321 = arith.index_cast %c6_i32 : i32 to index
    %c0_110 = arith.constant 0 : index
    %c0_111 = arith.constant 0 : index
    %322 = vector.load %arg2[%321, %c0_110, %c0_111] : memref<8x8x512xf32, #tpu.memory_space<vmem>>, vector<1x8x512xf32>
    %323 = vector.shape_cast %322 : vector<1x8x512xf32> to vector<8x512xf32>
    %324 = arith.truncf %319 : vector<8x128xf32> to vector<8x128xbf16>
    %cst_112 = arith.constant dense<0.000000e+00> : vector<8x512xf32>
    %325 = tpu.matmul %324, %4, %cst_112 {dimension_numbers = #tpu.dot_dimension_numbers<[1], [0], [0], [1], [0, 0, 1, 1], [], []>} : vector<8x128xbf16>, vector<128x512xbf16>, vector<8x512xf32> -> vector<8x512xf32>
    %326 = arith.addf %323, %325 : vector<8x512xf32>
    %327 = vector.extract_strided_slice %326 {offsets = [0, 0], sizes = [8, 128], strides = [1, 1]} : vector<8x512xf32> to vector<8x128xf32>
    %328 = arith.negf %327 : vector<8x128xf32>
    %329 = math.exp %328 : vector<8x128xf32>
    %cst_113 = arith.constant 1.000000e+00 : f32
    %330 = vector.broadcast %cst_113 : f32 to vector<8x128xf32>
    %331 = arith.addf %330, %329 : vector<8x128xf32>
    %332 = arith.divf %330, %331 : vector<8x128xf32>
    %333 = vector.extract_strided_slice %326 {offsets = [0, 128], sizes = [8, 128], strides = [1, 1]} : vector<8x512xf32> to vector<8x128xf32>
    %334 = arith.negf %333 : vector<8x128xf32>
    %335 = math.exp %334 : vector<8x128xf32>
    %cst_114 = arith.constant 1.000000e+00 : f32
    %336 = vector.broadcast %cst_114 : f32 to vector<8x128xf32>
    %337 = arith.addf %336, %335 : vector<8x128xf32>
    %338 = arith.divf %336, %337 : vector<8x128xf32>
    %339 = vector.extract_strided_slice %326 {offsets = [0, 256], sizes = [8, 128], strides = [1, 1]} : vector<8x512xf32> to vector<8x128xf32>
    %340 = math.tanh %339 : vector<8x128xf32>
    %341 = vector.extract_strided_slice %326 {offsets = [0, 384], sizes = [8, 128], strides = [1, 1]} : vector<8x512xf32> to vector<8x128xf32>
    %342 = arith.negf %341 : vector<8x128xf32>
    %343 = math.exp %342 : vector<8x128xf32>
    %cst_115 = arith.constant 1.000000e+00 : f32
    %344 = vector.broadcast %cst_115 : f32 to vector<8x128xf32>
    %345 = arith.addf %344, %343 : vector<8x128xf32>
    %346 = arith.divf %344, %345 : vector<8x128xf32>
    %347 = arith.mulf %338, %320 : vector<8x128xf32>
    %348 = arith.mulf %332, %340 : vector<8x128xf32>
    %349 = arith.addf %347, %348 : vector<8x128xf32>
    %350 = math.tanh %349 : vector<8x128xf32>
    %351 = arith.mulf %346, %350 : vector<8x128xf32>
    %352 = vector.broadcast %318 : i32 to vector<8x1xi32>
    %353 = arith.cmpi slt, %352, %3 : vector<8x1xi32>
    %354 = vector.shape_cast %353 : vector<8x1xi1> to vector<8x1xi1>
    %355 = vector.broadcast %354 : vector<8x1xi1> to vector<8x128xi1>
    %356 = arith.select %355, %351, %319 : vector<8x128xi1>, vector<8x128xf32>
    %c0_116 = arith.constant 0 : index
    %c0_117 = arith.constant 0 : index
    %357 = vector.load %arg7[%c0_116, %c0_117] : memref<8x128xf32, #tpu.memory_space<vmem>>, vector<8x128xf32>
    tpu.vector_store %arg7[%c0_116, %c0_117], %356 {strides = array<i32>} : memref<8x128xf32, #tpu.memory_space<vmem>>, vector<8x128xf32>,
    %358 = vector.shape_cast %353 : vector<8x1xi1> to vector<8x1xi1>
    %359 = vector.broadcast %358 : vector<8x1xi1> to vector<8x128xi1>
    %360 = arith.select %359, %349, %320 : vector<8x128xi1>, vector<8x128xf32>
    %c0_118 = arith.constant 0 : index
    %c0_119 = arith.constant 0 : index
    %361 = vector.load %arg8[%c0_118, %c0_119] : memref<8x128xf32, #tpu.memory_space<vmem>>, vector<8x128xf32>
    tpu.vector_store %arg8[%c0_118, %c0_119], %360 {strides = array<i32>} : memref<8x128xf32, #tpu.memory_space<vmem>>, vector<8x128xf32>,
    %cst_120 = arith.constant 0.000000e+00 : f32
    %362 = vector.shape_cast %353 : vector<8x1xi1> to vector<8x1xi1>
    %363 = vector.broadcast %362 : vector<8x1xi1> to vector<8x128xi1>
    %364 = vector.broadcast %cst_120 : f32 to vector<8x128xf32>
    %365 = arith.select %363, %351, %364 : vector<8x128xi1>, vector<8x128xf32>
    %366 = arith.index_cast %c6_i32 : i32 to index
    %c0_121 = arith.constant 0 : index
    %c0_122 = arith.constant 0 : index
    %367 = vector.load %arg5[%366, %c0_121, %c0_122] : memref<8x8x128xf32, #tpu.memory_space<vmem>>, vector<1x8x128xf32>
    %368 = vector.shape_cast %367 : vector<1x8x128xf32> to vector<8x128xf32>
    %369 = vector.shape_cast %365 : vector<8x128xf32> to vector<1x8x128xf32>
    tpu.vector_store %arg5[%366, %c0_121, %c0_122], %369 {strides = array<i32>} : memref<8x8x128xf32, #tpu.memory_space<vmem>>, vector<1x8x128xf32>,
    %c7_i32 = arith.constant 7 : i32
    %370 = arith.addi %5, %c7_i32 : i32
    %c0_123 = arith.constant 0 : index
    %c0_124 = arith.constant 0 : index
    %371 = vector.load %arg7[%c0_123, %c0_124] : memref<8x128xf32, #tpu.memory_space<vmem>>, vector<8x128xf32>
    %c0_125 = arith.constant 0 : index
    %c0_126 = arith.constant 0 : index
    %372 = vector.load %arg8[%c0_125, %c0_126] : memref<8x128xf32, #tpu.memory_space<vmem>>, vector<8x128xf32>
    %373 = arith.index_cast %c7_i32 : i32 to index
    %c0_127 = arith.constant 0 : index
    %c0_128 = arith.constant 0 : index
    %374 = vector.load %arg2[%373, %c0_127, %c0_128] : memref<8x8x512xf32, #tpu.memory_space<vmem>>, vector<1x8x512xf32>
    %375 = vector.shape_cast %374 : vector<1x8x512xf32> to vector<8x512xf32>
    %376 = arith.truncf %371 : vector<8x128xf32> to vector<8x128xbf16>
    %cst_129 = arith.constant dense<0.000000e+00> : vector<8x512xf32>
    %377 = tpu.matmul %376, %4, %cst_129 {dimension_numbers = #tpu.dot_dimension_numbers<[1], [0], [0], [1], [0, 0, 1, 1], [], []>} : vector<8x128xbf16>, vector<128x512xbf16>, vector<8x512xf32> -> vector<8x512xf32>
    %378 = arith.addf %375, %377 : vector<8x512xf32>
    %379 = vector.extract_strided_slice %378 {offsets = [0, 0], sizes = [8, 128], strides = [1, 1]} : vector<8x512xf32> to vector<8x128xf32>
    %380 = arith.negf %379 : vector<8x128xf32>
    %381 = math.exp %380 : vector<8x128xf32>
    %cst_130 = arith.constant 1.000000e+00 : f32
    %382 = vector.broadcast %cst_130 : f32 to vector<8x128xf32>
    %383 = arith.addf %382, %381 : vector<8x128xf32>
    %384 = arith.divf %382, %383 : vector<8x128xf32>
    %385 = vector.extract_strided_slice %378 {offsets = [0, 128], sizes = [8, 128], strides = [1, 1]} : vector<8x512xf32> to vector<8x128xf32>
    %386 = arith.negf %385 : vector<8x128xf32>
    %387 = math.exp %386 : vector<8x128xf32>
    %cst_131 = arith.constant 1.000000e+00 : f32
    %388 = vector.broadcast %cst_131 : f32 to vector<8x128xf32>
    %389 = arith.addf %388, %387 : vector<8x128xf32>
    %390 = arith.divf %388, %389 : vector<8x128xf32>
    %391 = vector.extract_strided_slice %378 {offsets = [0, 256], sizes = [8, 128], strides = [1, 1]} : vector<8x512xf32> to vector<8x128xf32>
    %392 = math.tanh %391 : vector<8x128xf32>
    %393 = vector.extract_strided_slice %378 {offsets = [0, 384], sizes = [8, 128], strides = [1, 1]} : vector<8x512xf32> to vector<8x128xf32>
    %394 = arith.negf %393 : vector<8x128xf32>
    %395 = math.exp %394 : vector<8x128xf32>
    %cst_132 = arith.constant 1.000000e+00 : f32
    %396 = vector.broadcast %cst_132 : f32 to vector<8x128xf32>
    %397 = arith.addf %396, %395 : vector<8x128xf32>
    %398 = arith.divf %396, %397 : vector<8x128xf32>
    %399 = arith.mulf %390, %372 : vector<8x128xf32>
    %400 = arith.mulf %384, %392 : vector<8x128xf32>
    %401 = arith.addf %399, %400 : vector<8x128xf32>
    %402 = math.tanh %401 : vector<8x128xf32>
    %403 = arith.mulf %398, %402 : vector<8x128xf32>
    %404 = vector.broadcast %370 : i32 to vector<8x1xi32>
    %405 = arith.cmpi slt, %404, %3 : vector<8x1xi32>
    %406 = vector.shape_cast %405 : vector<8x1xi1> to vector<8x1xi1>
    %407 = vector.broadcast %406 : vector<8x1xi1> to vector<8x128xi1>
    %408 = arith.select %407, %403, %371 : vector<8x128xi1>, vector<8x128xf32>
    %c0_133 = arith.constant 0 : index
    %c0_134 = arith.constant 0 : index
    %409 = vector.load %arg7[%c0_133, %c0_134] : memref<8x128xf32, #tpu.memory_space<vmem>>, vector<8x128xf32>
    tpu.vector_store %arg7[%c0_133, %c0_134], %408 {strides = array<i32>} : memref<8x128xf32, #tpu.memory_space<vmem>>, vector<8x128xf32>,
    %410 = vector.shape_cast %405 : vector<8x1xi1> to vector<8x1xi1>
    %411 = vector.broadcast %410 : vector<8x1xi1> to vector<8x128xi1>
    %412 = arith.select %411, %401, %372 : vector<8x128xi1>, vector<8x128xf32>
    %c0_135 = arith.constant 0 : index
    %c0_136 = arith.constant 0 : index
    %413 = vector.load %arg8[%c0_135, %c0_136] : memref<8x128xf32, #tpu.memory_space<vmem>>, vector<8x128xf32>
    tpu.vector_store %arg8[%c0_135, %c0_136], %412 {strides = array<i32>} : memref<8x128xf32, #tpu.memory_space<vmem>>, vector<8x128xf32>,
    %cst_137 = arith.constant 0.000000e+00 : f32
    %414 = vector.shape_cast %405 : vector<8x1xi1> to vector<8x1xi1>
    %415 = vector.broadcast %414 : vector<8x1xi1> to vector<8x128xi1>
    %416 = vector.broadcast %cst_137 : f32 to vector<8x128xf32>
    %417 = arith.select %415, %403, %416 : vector<8x128xi1>, vector<8x128xf32>
    %418 = arith.index_cast %c7_i32 : i32 to index
    %c0_138 = arith.constant 0 : index
    %c0_139 = arith.constant 0 : index
    %419 = vector.load %arg5[%418, %c0_138, %c0_139] : memref<8x8x128xf32, #tpu.memory_space<vmem>>, vector<1x8x128xf32>
    %420 = vector.shape_cast %419 : vector<1x8x128xf32> to vector<8x128xf32>
    %421 = vector.shape_cast %417 : vector<8x128xf32> to vector<1x8x128xf32>
    tpu.vector_store %arg5[%418, %c0_138, %c0_139], %421 {strides = array<i32>} : memref<8x8x128xf32, #tpu.memory_space<vmem>>, vector<1x8x128xf32>,
    %c8_i32_140 = arith.constant 8 : i32
    %c1_i32_141 = arith.constant 1 : i32
    %422 = arith.cmpi eq, %arg1, %c1_i32_141 : i32
    %423 = arith.extui %422 : i1 to i32
    %c0_i32_142 = arith.constant 0 : i32
    %424 = arith.cmpi ne, %423, %c0_i32_142 : i32
    scf.if %424 {
      %c0_143 = arith.constant 0 : index
      %c0_144 = arith.constant 0 : index
      %425 = vector.load %arg7[%c0_143, %c0_144] : memref<8x128xf32, #tpu.memory_space<vmem>>, vector<8x128xf32>
      %c0_145 = arith.constant 0 : index
      %c0_146 = arith.constant 0 : index
      %426 = vector.load %arg6[%c0_145, %c0_146] : memref<8x128xf32, #tpu.memory_space<vmem>>, vector<8x128xf32>
      tpu.vector_store %arg6[%c0_145, %c0_146], %425 {strides = array<i32>} : memref<8x128xf32, #tpu.memory_space<vmem>>, vector<8x128xf32>,
    } else {
    }
    return
  }
  func.func @transform_0(%arg0: i32, %arg1: i32) -> (i32, i32, i32) {
    %c0_i32 = arith.constant 0 : i32
    %c0_i32_0 = arith.constant 0 : i32
    return %arg1, %arg0, %c0_i32 : i32, i32, i32
  }
  func.func @transform_1(%arg0: i32, %arg1: i32) -> (i32, i32) {
    %c0_i32 = arith.constant 0 : i32
    %c0_i32_0 = arith.constant 0 : i32
    return %arg0, %c0_i32 : i32, i32
  }
  func.func @transform_2(%arg0: i32, %arg1: i32) -> (i32, i32) {
    %c0_i32 = arith.constant 0 : i32
    %c0_i32_0 = arith.constant 0 : i32
    %c0_i32_1 = arith.constant 0 : i32
    return %c0_i32, %c0_i32_0 : i32, i32
  }
  func.func @transform_3(%arg0: i32, %arg1: i32) -> (i32, i32, i32) {
    %c0_i32 = arith.constant 0 : i32
    %c0_i32_0 = arith.constant 0 : i32
    return %arg1, %arg0, %c0_i32 : i32, i32, i32
  }
  func.func @transform_4(%arg0: i32, %arg1: i32) -> (i32, i32) {
    %c0_i32 = arith.constant 0 : i32
    %c0_i32_0 = arith.constant 0 : i32
    return %arg0, %c0_i32 : i32, i32
  }
}

</mosaic_0001>

<llo_original>
// kernel: tpu_custom_call.1
$region0: #{tpu_custom_call.1}
  #allocation0 [shape = 'u32[]', space=smem, size = 0x4, offset = 0x4, fixed_abs, tag = 'smem constant byte address 0x4 - core index']
  #allocation1 [shape = 'u32[144,128]{1,0:T(1,128)}', space=vmem, size = 0x12000, scoped, tag = 'internal scratch']
  #allocation2 [shape = 'f32[8,128]{1,0:T(8,128)}', space=vmem, size = 0x1000, scoped, tag = 'scratch operand']
  #allocation3 [shape = 'f32[8,128]{1,0:T(8,128)}', space=vmem, size = 0x1000, scoped, tag = 'scratch operand']
  %s0 = inlined_call_operand.hbm [shape: f32[16,8,512], index: 0, kind: input, shape index: {}]
  %s1 = inlined_call_operand.vmem [shape: s32[8,1], index: 1, kind: input, shape index: {}]
  %s2 = inlined_call_operand.hbm [shape: bf16[128,512], index: 2, kind: input, shape index: {}]
  %s3 = inlined_call_operand.hbm [shape: f32[16,8,128], index: 3, kind: output, shape index: {0}]
  %s4 = inlined_call_operand.hbm [shape: f32[8,128], index: 4, kind: output, shape index: {1}]
  %5 = xla_tuple %s3, %s4
  %s6 = sld [smem:[#allocation0]]
  $region69: #{tpu_custom_call.1} parent=0
    _
  %s8 = ssub.s32 1, %s6
  %s9 = scalar_select 0, %s8, %s6
  $region1: #{tpu_custom_call.1} parent=0
    #allocation4 [shape = 'u8[262144]{0}', space=vmem, size = 0x40000, scoped, tag = 'input window, operand 0']
    #allocation5 [shape = 's32[2]{0}', space=sflag, size = 0x8, scoped, tag = 'scoped memory for tpu_custom_call.1']
    #allocation6 [shape = 's32[2]{0}', space=sflag, size = 0x8, scoped, tag = 'scoped memory for tpu_custom_call.1']
    #allocation7 [shape = 'u8[131072]{0}', space=vmem, size = 0x20000, scoped, tag = 'input window, operand 2, single buffered']
    #allocation8 [shape = 's32[1]{0}', space=sflag, size = 0x4, scoped, tag = 'scoped memory for tpu_custom_call.1']
    #allocation9 [shape = 'u8[65536]{0}', space=vmem, size = 0x10000, scoped, tag = 'output window, operand 0']
    #allocation10 [shape = 'u8[4096]{0}', space=vmem, size = 0x1000, scoped, tag = 'output window, operand 1, single buffered']
    #allocation11 [shape = 's32[1]{0}', space=sflag, size = 0x4, scoped, tag = 'scoped memory for tpu_custom_call.1']
    %10 = vsyncpa [#allocation5], 0
    %s11 = scalar_lea.sflag [#allocation5], 1
    %12 = vsyncpa %s11, 0
    %13 = vsyncpa [#allocation8], 0
    %14 = vsyncpa [#allocation6], 0
    %s15 = scalar_lea.sflag [#allocation6], 1
    %16 = vsyncpa %s15, 0
    %17 = vsyncpa [#allocation11], 0
    loop: start=0, step=1, limit=4
    $region2: #{tpu_custom_call.1} parent=1 // loop_pre_header
      _
    $region3: #{tpu_custom_call.1} parent=1 // loop_header
      %s19 = sphi 0, %s23
      %p20 = scmp.ge.s32.totalorder %s19, 4
      %s26 = sphi 0, %s38
      %s27 = sphi 0, %s34
      %s28 = sphi 0, %s26
      %s29 = sphi 0, %s27
      %s30 = sphi 0, %s28
      %s31 = sphi 0, %s29
      %s43 = sphi 0, %s45
      %s46 = sphi 0, %s43
      %s47 = sphi 0, %s46
      %s63 = sphi 0, %s47
      %s69 = sphi 0, %s71
      %s72 = sphi 0, %s69
      %s73 = sphi 0, %s72
      %s89 = sphi 0, %s73
      %s93 = sphi 0, %s93
      %s95 = sphi 0, %s93
      %s96 = sphi 0, %s95
      %s110 = sphi 0, %s96
      %s118 = sphi 0, %s120
      %s121 = sphi 0, %s118
      %s122 = sphi 0, %s121
      %s138 = sphi 0, %s122
      %s144 = sphi 0, %s146
      %s147 = sphi 0, %s144
      %s148 = sphi 0, %s147
      %s164 = sphi 0, %s148
    $region4: #{tpu_custom_call.1} parent=1 // loop_header_branch
      %22 = sbr.rel (%p20) target = $region8
    $region5: #{tpu_custom_call.1} parent=1 // loop_body
      %s24 = ssub.s32 %s19, 1
      %s25 = ssub.s32 %s19, 2
      %s32 = sadd.s32 1, %s27
      %p33 = scmp.ge.s32.totalorder %s32, 2
      %s34 = scalar_select %p33, 0, %s32
      %s35 = sadd.s32 1, %s26
      %s36 = scalar_select %p33, %s35, %s26
      %p37 = scmp.ge.s32.totalorder %s36, 1
      %s38 = scalar_select %p37, 0, %s36
      %s39 = ssub.s32 %s27, %s34
      %s40 = ssub.s32 %s26, %s38
      %s41 = sor.u32 %s39, %s40
      %p42 = scmp.eq.s32.totalorder %s41, 0
      %s44 = sadd.s32 %s43, 1
      %s45 = scalar_select %p42, %s43, %s44
      %p48 = pneg %p42
      %p49 = scmp.eq.s32.totalorder %s19, 1
      %p50 = por %p48, %p49
      %p51 = scmp.ne.s32.totalorder %s43, %s46
      %p52 = scmp.eq.s32.totalorder %s19, 0
      %p53 = por %p51, %p52
      %p54 = scmp.ne.s32.totalorder %s43, %s46
      %p55 = scmp.eq.s32.totalorder %s24, 1
      %p56 = por %p54, %p55
      %p57 = scmp.ne.s32.totalorder %s46, %s47
      %p58 = scmp.eq.s32.totalorder %s24, 0
      %p59 = por %p57, %p58
      %p60 = scmp.ne.s32.totalorder %s46, %s47
      %p61 = scmp.eq.s32.totalorder %s25, 1
      %p62 = por %p60, %p61
      %p64 = scmp.ne.s32.totalorder %s47, %s63
      %p65 = scmp.eq.s32.totalorder %s25, 0
      %p66 = por %p64, %p65
      %s67 = ssub.s32 %s26, %s38
      %p68 = scmp.eq.s32.totalorder %s67, 0
      %s70 = sadd.s32 %s69, 1
      %s71 = scalar_select %p68, %s69, %s70
      %p74 = pneg %p68
      %p75 = scmp.eq.s32.totalorder %s19, 1
      %p76 = por %p74, %p75
      %p77 = scmp.ne.s32.totalorder %s69, %s72
      %p78 = scmp.eq.s32.totalorder %s19, 0
      %p79 = por %p77, %p78
      %p80 = scmp.ne.s32.totalorder %s69, %s72
      %p81 = scmp.eq.s32.totalorder %s24, 1
      %p82 = por %p80, %p81
      %p83 = scmp.ne.s32.totalorder %s72, %s73
      %p84 = scmp.eq.s32.totalorder %s24, 0
      %p85 = por %p83, %p84
      %p86 = scmp.ne.s32.totalorder %s72, %s73
      %p87 = scmp.eq.s32.totalorder %s25, 1
      %p88 = por %p86, %p87
      %p90 = scmp.ne.s32.totalorder %s73, %s89
      %p91 = scmp.eq.s32.totalorder %s25, 0
      %p92 = por %p90, %p91
      %s94 = sadd.s32 %s93, 1
      %p97 = scmp.eq.s32.totalorder %s19, 1
      %p98 = scmp.ne.s32.totalorder %s93, %s95
      %p99 = scmp.eq.s32.totalorder %s19, 0
      %p100 = por %p98, %p99
      %p101 = scmp.ne.s32.totalorder %s93, %s95
      %p102 = scmp.eq.s32.totalorder %s24, 1
      %p103 = por %p101, %p102
      %p104 = scmp.ne.s32.totalorder %s95, %s96
      %p105 = scmp.eq.s32.totalorder %s24, 0
      %p106 = por %p104, %p105
      %p107 = scmp.ne.s32.totalorder %s95, %s96
      %p108 = scmp.eq.s32.totalorder %s25, 1
      %p109 = por %p107, %p108
      %p111 = scmp.ne.s32.totalorder %s96, %s110
      %p112 = scmp.eq.s32.totalorder %s25, 0
      %p113 = por %p111, %p112
      %s114 = ssub.s32 %s27, %s34
      %s115 = ssub.s32 %s26, %s38
      %s116 = sor.u32 %s114, %s115
      %p117 = scmp.eq.s32.totalorder %s116, 0
      %s119 = sadd.s32 %s118, 1
      %s120 = scalar_select %p117, %s118, %s119
      %p123 = pneg %p117
      %p124 = scmp.eq.s32.totalorder %s19, 1
      %p125 = por %p123, %p124
      %p126 = scmp.ne.s32.totalorder %s118, %s121
      %p127 = scmp.eq.s32.totalorder %s19, 0
      %p128 = por %p126, %p127
      %p129 = scmp.ne.s32.totalorder %s118, %s121
      %p130 = scmp.eq.s32.totalorder %s24, 1
      %p131 = por %p129, %p130
      %p132 = scmp.ne.s32.totalorder %s121, %s122
      %p133 = scmp.eq.s32.totalorder %s24, 0
      %p134 = por %p132, %p133
      %p135 = scmp.ne.s32.totalorder %s121, %s122
      %p136 = scmp.eq.s32.totalorder %s25, 1
      %p137 = por %p135, %p136
      %p139 = scmp.ne.s32.totalorder %s122, %s138
      %p140 = scmp.eq.s32.totalorder %s25, 0
      %p141 = por %p139, %p140
      %s142 = ssub.s32 %s26, %s38
      %p143 = scmp.eq.s32.totalorder %s142, 0
      %s145 = sadd.s32 %s144, 1
      %s146 = scalar_select %p143, %s144, %s145
      %p149 = pneg %p143
      %p150 = scmp.eq.s32.totalorder %s19, 1
      %p151 = por %p149, %p150
      %p152 = scmp.ne.s32.totalorder %s144, %s147
      %p153 = scmp.eq.s32.totalorder %s19, 0
      %p154 = por %p152, %p153
      %p155 = scmp.ne.s32.totalorder %s144, %s147
      %p156 = scmp.eq.s32.totalorder %s24, 1
      %p157 = por %p155, %p156
      %p158 = scmp.ne.s32.totalorder %s147, %s148
      %p159 = scmp.eq.s32.totalorder %s24, 0
      %p160 = por %p158, %p159
      %p161 = scmp.ne.s32.totalorder %s147, %s148
      %p162 = scmp.eq.s32.totalorder %s25, 1
      %p163 = por %p161, %p162
      %p165 = scmp.ne.s32.totalorder %s148, %s164
      %p166 = scmp.eq.s32.totalorder %s25, 0
      %p167 = por %p165, %p166
      %p168 = scmp.le.s32.totalorder 1, %s19
      %p169 = scmp.lt.s32.totalorder %s19, 3
      %p170 = pnand %p168, %p169
      %p171 = pneg %p170
      // Predicated region
      $region9: #{tpu_custom_call.1} parent=5 // pred_check
        _
      $region10: #{tpu_custom_call.1} parent=5 // pred_check_branch
        %173 = sbr.rel (%p170) target = $region12
      $region11: #{tpu_custom_call.1} parent=5 // pred_region
        %s174 = ssub.s32 %s19, 1
        // Predicated region
        $region13: #{tpu_custom_call.1} parent=11 // pred_check
          %p175 = pneg %p85
        $region14: #{tpu_custom_call.1} parent=11 // pred_check_branch
          %177 = sbr.rel (%p175) target = $region16
        $region15: #{tpu_custom_call.1} parent=11 // pred_region
          %p178 = scmp.lt.s32.totalorder %s28, 0
          %s179 = scalar_select %p178, %s28, 0
          %s180 = smul.addr %s179, 8
          %s181 = scalar_lea.vmem %s1, %s180
        $region16: #{tpu_custom_call.1} parent=11 // pred_fallthru
          _
        // Predicated region
        $region17: #{tpu_custom_call.1} parent=11 // pred_check
          %p182 = pneg %p106
        $region18: #{tpu_custom_call.1} parent=11 // pred_check_branch
          %184 = sbr.rel (%p182) target = $region20
        $region19: #{tpu_custom_call.1} parent=11 // pred_region
          %s186 = ssub.s32 4096, 4096
          %187 = vsyncadd [#allocation8], %s186
          %s188 = sshll.u32 [#allocation7], 4
          %s189 = int_to_ptr.vmem [resolvable:$true] %s188
          %194 = dma.hbm_to_vmem [thread:$0]  %s2, 4096, %s189, [#allocation8], 256, 256, 16
        $region20: #{tpu_custom_call.1} parent=11 // pred_fallthru
          _
      $region12: #{tpu_custom_call.1} parent=5 // pred_fallthru
        _
      %p195 = scmp.lt.s32.totalorder %s19, 2
      // Predicated region
      $region21: #{tpu_custom_call.1} parent=5 // pred_check
        %p196 = pneg %p195
      $region22: #{tpu_custom_call.1} parent=5 // pred_check_branch
        %198 = sbr.rel (%p196) target = $region24
      $region23: #{tpu_custom_call.1} parent=5 // pred_region
        // Predicated region
        $region25: #{tpu_custom_call.1} parent=23 // pred_check
          %p199 = pneg %p53
        $region26: #{tpu_custom_call.1} parent=23 // pred_check_branch
          %201 = sbr.rel (%p199) target = $region28
        $region27: #{tpu_custom_call.1} parent=23 // pred_region
          %s202 = sand.u32 %s43, 1
          %s203 = scalar_lea.sflag [#allocation5], %s202
          %s204 = sand.u32 %s43, 1
          %s205 = smul.addr %s204, 256
          %s206 = scalar_lea.vmem [#allocation4], %s205
          %s207 = smul.u32 8, %s27
          %s209 = ssub.s32 4096, 4096
          %210 = vsyncadd %s203, %s209
          %s211 = smul.addr %s26, 4
          %s212 = smul.addr %s207, 4
          %s213 = sadd.s32 %s211, %s212
          %s214 = smul.addr %s213, 128
          %s215 = scalar_lea.hbm %s0, %s214
          %s216 = sshll.u32 %s206, 4
          %s217 = int_to_ptr.vmem [resolvable:$true] %s216
          %222 = dma.hbm_to_vmem [thread:$0]  %s215, 4096, %s217, %s203, 512, 512, 32
        $region28: #{tpu_custom_call.1} parent=23 // pred_fallthru
          _
      $region24: #{tpu_custom_call.1} parent=5 // pred_fallthru
        _
      %p223 = scmp.le.s32.totalorder 1, %s19
      %p224 = scmp.lt.s32.totalorder %s19, 3
      %p225 = pnand %p223, %p224
      %p226 = pneg %p225
      // Predicated region
      $region29: #{tpu_custom_call.1} parent=5 // pred_check
        _
      $region30: #{tpu_custom_call.1} parent=5 // pred_check_branch
        %228 = sbr.rel (%p225) target = $region32
      $region31: #{tpu_custom_call.1} parent=5 // pred_region
        %s229 = ssub.s32 %s19, 1
        %s230 = sand.u32 %s46, 1
        %s231 = scalar_lea.sflag [#allocation5], %s230
        %s232 = sand.u32 %s46, 1
        %s233 = smul.addr %s232, 256
        %s234 = scalar_lea.vmem [#allocation4], %s233
        // Predicated region
        $region33: #{tpu_custom_call.1} parent=31 // pred_check
          %p235 = pneg %p59
        $region34: #{tpu_custom_call.1} parent=31 // pred_check_branch
          %237 = sbr.rel (%p235) target = $region36
        $region35: #{tpu_custom_call.1} parent=31 // pred_region
          %238 = dma.done %s231, 4096
        $region36: #{tpu_custom_call.1} parent=31 // pred_fallthru
          _
        // Predicated region
        $region37: #{tpu_custom_call.1} parent=31 // pred_check
          %p239 = pneg %p106
        $region38: #{tpu_custom_call.1} parent=31 // pred_check_branch
          %241 = sbr.rel (%p239) target = $region40
        $region39: #{tpu_custom_call.1} parent=31 // pred_region
          %242 = dma.done [#allocation8], 4096
        $region40: #{tpu_custom_call.1} parent=31 // pred_fallthru
          _
        %s243 = sand.u32 %s46, 1
        %s244 = scalar_lea.sflag [#allocation5], %s243
        %s245 = sand.u32 %s46, 1
        %s246 = smul.addr %s245, 256
        %s247 = scalar_lea.vmem [#allocation4], %s246
        %p248 = pneg %p59
        %p249 = pneg %p56
        %p250 = scmp.lt.s32.totalorder %s28, 0
        %s251 = scalar_select %p250, %s28, 0
        %s252 = smul.addr %s251, 8
        %s253 = scalar_lea.vmem %s1, %s252
        %p254 = pneg %p85
        %p255 = pneg %p82
        %p256 = pneg %p106
        %p257 = pneg %p103
        %p258 = pneg %p134
        %p259 = pneg %p131
        %s260 = sand.u32 %s121, 1
        %s261 = scalar_lea.sflag [#allocation6], %s260
        %s262 = sand.u32 %s121, 1
        %s263 = smul.addr %s262, 64
        %s264 = scalar_lea.vmem [#allocation9], %s263
        %p265 = pneg %p160
        %p266 = pneg %p157
        %s267 = smul.u32 8, %s29
        %p268 = scmp.lt.s32.totalorder %s28, 0
        %s269 = scalar_select %p268, %s28, 0
        %s270 = smul.addr %s269, 8
        %s271 = scalar_lea.vmem %s1, %s270
        %s272 = smul.u32 8, %s29
        %p274 = scmp.eq.s32.totalorder %s29, 0
        // Predicated region
        $region41: #{tpu_custom_call.1} parent=31 // pred_check
          %p275 = pneg %p274
        $region42: #{tpu_custom_call.1} parent=31 // pred_check_branch
          %277 = sbr.rel (%p275) target = $region44
        $region43: #{tpu_custom_call.1} parent=31 // pred_region
          %278 = vst [vmem:[#allocation2] sm:$0xff] 0.0
          %279 = vst [vmem:[#allocation3] sm:$0xff] 0.0
        $region44: #{tpu_custom_call.1} parent=31 // pred_fallthru
          _
        %v280 = vld [vmem:[%s271] sm:$0xff]
        %v281 = vld [vmem:[#allocation7] sm:$0xff]
        %v282 = vld [vmem:[#allocation7 + $0x8] sm:$0xff]
        %v283 = vld [vmem:[#allocation7 + $0x10] sm:$0xff]
        %v284 = vld [vmem:[#allocation7 + $0x18] sm:$0xff]
        %v285 = vld [vmem:[#allocation7 + $0x20] sm:$0xff]
        %v286 = vld [vmem:[#allocation7 + $0x28] sm:$0xff]
        %v287 = vld [vmem:[#allocation7 + $0x30] sm:$0xff]
        %v288 = vld [vmem:[#allocation7 + $0x38] sm:$0xff]
        %v289 = vld [vmem:[#allocation7 + $0x40] sm:$0xff]
        %v290 = vld [vmem:[#allocation7 + $0x48] sm:$0xff]
        %v291 = vld [vmem:[#allocation7 + $0x50] sm:$0xff]
        %v292 = vld [vmem:[#allocation7 + $0x58] sm:$0xff]
        %v293 = vld [vmem:[#allocation7 + $0x60] sm:$0xff]
        %v294 = vld [vmem:[#allocation7 + $0x68] sm:$0xff]
        %v295 = vld [vmem:[#allocation7 + $0x70] sm:$0xff]
        %v296 = vld [vmem:[#allocation7 + $0x78] sm:$0xff]
        %v297 = vld [vmem:[#allocation7 + $0x80] sm:$0xff]
        %v298 = vld [vmem:[#allocation7 + $0x88] sm:$0xff]
        %v299 = vld [vmem:[#allocation7 + $0x90] sm:$0xff]
        %v300 = vld [vmem:[#allocation7 + $0x98] sm:$0xff]
        %v301 = vld [vmem:[#allocation7 + $0xa0] sm:$0xff]
        %v302 = vld [vmem:[#allocation7 + $0xa8] sm:$0xff]
        %v303 = vld [vmem:[#allocation7 + $0xb0] sm:$0xff]
        %v304 = vld [vmem:[#allocation7 + $0xb8] sm:$0xff]
        %v305 = vld [vmem:[#allocation7 + $0xc0] sm:$0xff]
        %v306 = vld [vmem:[#allocation7 + $0xc8] sm:$0xff]
        %v307 = vld [vmem:[#allocation7 + $0xd0] sm:$0xff]
        %v308 = vld [vmem:[#allocation7 + $0xd8] sm:$0xff]
        %v309 = vld [vmem:[#allocation7 + $0xe0] sm:$0xff]
        %v310 = vld [vmem:[#allocation7 + $0xe8] sm:$0xff]
        %v311 = vld [vmem:[#allocation7 + $0xf0] sm:$0xff]
        %v312 = vld [vmem:[#allocation7 + $0xf8] sm:$0xff]
        %s313 = smul.u32 %s29, 8
        %v314 = vld [vmem:[#allocation2] sm:$0xff]
        %v315 = vld [vmem:[#allocation3] sm:$0xff]
        %v316 = vld [vmem:[%s234] sm:$0xff]
        %v317 = vld [vmem:[%s234 + $0x8] sm:$0xff]
        %v318 = vld [vmem:[%s234 + $0x10] sm:$0xff]
        %v319 = vld [vmem:[%s234 + $0x18] sm:$0xff]
        %v320 = vpack.c.bf16 %v314, %v314
        %v353 = vunpack.c.l.b16 %v281
        %v354 = vunpack.c.h.b16 %v281
        %v355 = vunpack.c.l.b16 %v282
        %v356 = vunpack.c.h.b16 %v282
        %v357 = vunpack.c.l.b16 %v283
        %v358 = vunpack.c.h.b16 %v283
        %v359 = vunpack.c.l.b16 %v284
        %v360 = vunpack.c.h.b16 %v284
        %v361 = vunpack.c.l.b16 %v285
        %v362 = vunpack.c.h.b16 %v285
        %v363 = vunpack.c.l.b16 %v286
        %v364 = vunpack.c.h.b16 %v286
        %v365 = vunpack.c.l.b16 %v287
        %v366 = vunpack.c.h.b16 %v287
        %v367 = vunpack.c.l.b16 %v288
        %v368 = vunpack.c.h.b16 %v288
        %v369 = vunpack.c.l.b16 %v289
        %v370 = vunpack.c.h.b16 %v289
        %v371 = vunpack.c.l.b16 %v290
        %v372 = vunpack.c.h.b16 %v290
        %v373 = vunpack.c.l.b16 %v291
        %v374 = vunpack.c.h.b16 %v291
        %v375 = vunpack.c.l.b16 %v292
        %v376 = vunpack.c.h.b16 %v292
        %v377 = vunpack.c.l.b16 %v293
        %v378 = vunpack.c.h.b16 %v293
        %v379 = vunpack.c.l.b16 %v294
        %v380 = vunpack.c.h.b16 %v294
        %v381 = vunpack.c.l.b16 %v295
        %v382 = vunpack.c.h.b16 %v295
        %v383 = vunpack.c.l.b16 %v296
        %v384 = vunpack.c.h.b16 %v296
        %v385 = vunpack.c.l.b16 %v297
        %v386 = vunpack.c.h.b16 %v297
        %v387 = vunpack.c.l.b16 %v298
        %v388 = vunpack.c.h.b16 %v298
        %v389 = vunpack.c.l.b16 %v299
        %v390 = vunpack.c.h.b16 %v299
        %v391 = vunpack.c.l.b16 %v300
        %v392 = vunpack.c.h.b16 %v300
        %v393 = vunpack.c.l.b16 %v301
        %v394 = vunpack.c.h.b16 %v301
        %v395 = vunpack.c.l.b16 %v302
        %v396 = vunpack.c.h.b16 %v302
        %v397 = vunpack.c.l.b16 %v303
        %v398 = vunpack.c.h.b16 %v303
        %v399 = vunpack.c.l.b16 %v304
        %v400 = vunpack.c.h.b16 %v304
        %v401 = vunpack.c.l.b16 %v305
        %v402 = vunpack.c.h.b16 %v305
        %v403 = vunpack.c.l.b16 %v306
        %v404 = vunpack.c.h.b16 %v306
        %v405 = vunpack.c.l.b16 %v307
        %v406 = vunpack.c.h.b16 %v307
        %v407 = vunpack.c.l.b16 %v308
        %v408 = vunpack.c.h.b16 %v308
        %v409 = vunpack.c.l.b16 %v309
        %v410 = vunpack.c.h.b16 %v309
        %v411 = vunpack.c.l.b16 %v310
        %v412 = vunpack.c.h.b16 %v310
        %v413 = vunpack.c.l.b16 %v311
        %v414 = vunpack.c.h.b16 %v311
        %v415 = vunpack.c.l.b16 %v312
        %v416 = vunpack.c.h.b16 %v312
        %v417 = vpack.c.b16 %v357, %v353
        %v418 = vpack.c.b16 %v358, %v354
        %v419 = vpack.c.b16 %v359, %v355
        %v420 = vpack.c.b16 %v360, %v356
        %v421 = vpack.c.b16 %v365, %v361
        %v422 = vpack.c.b16 %v366, %v362
        %v423 = vpack.c.b16 %v367, %v363
        %v424 = vpack.c.b16 %v368, %v364
        %v425 = vpack.c.b16 %v373, %v369
        %v426 = vpack.c.b16 %v374, %v370
        %v427 = vpack.c.b16 %v375, %v371
        %v428 = vpack.c.b16 %v376, %v372
        %v429 = vpack.c.b16 %v381, %v377
        %v430 = vpack.c.b16 %v382, %v378
        %v431 = vpack.c.b16 %v383, %v379
        %v432 = vpack.c.b16 %v384, %v380
        %v433 = vpack.c.b16 %v389, %v385
        %v434 = vpack.c.b16 %v390, %v386
        %v435 = vpack.c.b16 %v391, %v387
        %v436 = vpack.c.b16 %v392, %v388
        %v437 = vpack.c.b16 %v397, %v393
        %v438 = vpack.c.b16 %v398, %v394
        %v439 = vpack.c.b16 %v399, %v395
        %v440 = vpack.c.b16 %v400, %v396
        %v441 = vpack.c.b16 %v405, %v401
        %v442 = vpack.c.b16 %v406, %v402
        %v443 = vpack.c.b16 %v407, %v403
        %v444 = vpack.c.b16 %v408, %v404
        %v445 = vpack.c.b16 %v413, %v409
        %v446 = vpack.c.b16 %v414, %v410
        %v447 = vpack.c.b16 %v415, %v411
        %v448 = vpack.c.b16 %v416, %v412
        %481 = vmatprep.subr.bf16.mxu0 %v418
        %482 = vmatpush1.bf16.msra.mxu0 %v417
        %483 = vmatprep.subr.bf16.mxu0 %v422
        %484 = vmatpush1.bf16.msra.mxu0 %v421
        %485 = vmatprep.subr.bf16.mxu0 %v426
        %486 = vmatpush1.bf16.msra.mxu0 %v425
        %487 = vmatprep.subr.bf16.mxu0 %v430
        %488 = vmatpush1.bf16.msra.mxu0 %v429
        %489 = vmatprep.subr.bf16.mxu0 %v434
        %490 = vmatpush1.bf16.msra.mxu0 %v433
        %491 = vmatprep.subr.bf16.mxu0 %v438
        %492 = vmatpush1.bf16.msra.mxu0 %v437
        %493 = vmatprep.subr.bf16.mxu0 %v442
        %494 = vmatpush1.bf16.msra.mxu0 %v441
        %495 = vmatprep.subr.bf16.mxu0 %v446
        %496 = vmatpush1.bf16.msra.mxu0 %v445
        %497 = vmatprep.subr.bf16.mxu0 0
        %498 = vmatpush1.bf16.msra.mxu0 0
        %499 = vmatprep.subr.bf16.mxu0 0
        %500 = vmatpush1.bf16.msra.mxu0 0
        %501 = vmatprep.subr.bf16.mxu0 0
        %502 = vmatpush1.bf16.msra.mxu0 0
        %503 = vmatprep.subr.bf16.mxu0 0
        %504 = vmatpush1.bf16.msra.mxu0 0
        %505 = vmatprep.subr.bf16.mxu0 0
        %506 = vmatpush1.bf16.msra.mxu0 0
        %507 = vmatprep.subr.bf16.mxu0 0
        %508 = vmatpush1.bf16.msra.mxu0 0
        %509 = vmatprep.subr.bf16.mxu0 0
        %510 = vmatpush1.bf16.msra.mxu0 0
        %511 = vmatprep.subr.bf16.mxu0 0
        %512 = vmatpush1.bf16.msra.mxu0 0
        %513 = vmatprep.mubr.bf16.mxu0 0
        %514 = vmatmul.mubr.bf16.gmra.mrb[0].mxu0 %v320
        %v515 = vpop.f32.mrb[0].mxu0
        %v516 = vadd.f32 0.0, %v515
        %v517 = vpop.f32.mrb[0].mxu0
        %v518 = vadd.f32 0.0, %v517
        %v519 = vpop.f32.mrb[0].mxu0
        %v520 = vpop.f32.mrb[0].mxu0
        %521 = vdwg.mxu0
        %522 = vmatprep.subr.bf16.mxu0 %v420
        %523 = vmatpush1.bf16.msra.mxu0 %v419
        %524 = vmatprep.subr.bf16.mxu0 %v424
        %525 = vmatpush1.bf16.msra.mxu0 %v423
        %526 = vmatprep.subr.bf16.mxu0 %v428
        %527 = vmatpush1.bf16.msra.mxu0 %v427
        %528 = vmatprep.subr.bf16.mxu0 %v432
        %529 = vmatpush1.bf16.msra.mxu0 %v431
        %530 = vmatprep.subr.bf16.mxu0 %v436
        %531 = vmatpush1.bf16.msra.mxu0 %v435
        %532 = vmatprep.subr.bf16.mxu0 %v440
        %533 = vmatpush1.bf16.msra.mxu0 %v439
        %534 = vmatprep.subr.bf16.mxu0 %v444
        %535 = vmatpush1.bf16.msra.mxu0 %v443
        %536 = vmatprep.subr.bf16.mxu0 %v448
        %537 = vmatpush1.bf16.msra.mxu0 %v447
        %538 = vmatprep.subr.bf16.mxu0 0
        %539 = vmatpush1.bf16.msra.mxu0 0
        %540 = vmatprep.subr.bf16.mxu0 0
        %541 = vmatpush1.bf16.msra.mxu0 0
        %542 = vmatprep.subr.bf16.mxu0 0
        %543 = vmatpush1.bf16.msra.mxu0 0
        %544 = vmatprep.subr.bf16.mxu0 0
        %545 = vmatpush1.bf16.msra.mxu0 0
        %546 = vmatprep.subr.bf16.mxu0 0
        %547 = vmatpush1.bf16.msra.mxu0 0
        %548 = vmatprep.subr.bf16.mxu0 0
        %549 = vmatpush1.bf16.msra.mxu0 0
        %550 = vmatprep.subr.bf16.mxu0 0
        %551 = vmatpush1.bf16.msra.mxu0 0
        %552 = vmatprep.subr.bf16.mxu0 0
        %553 = vmatpush1.bf16.msra.mxu0 0
        %554 = vmatprep.mubr.bf16.mxu0 0
        %555 = vmatmul.mubr.bf16.gmra.mrb[0].mxu0 %v320
        %v556 = vpop.f32.mrb[0].mxu0
        %v557 = vadd.f32 0.0, %v556
        %v558 = vpop.f32.mrb[0].mxu0
        %v559 = vadd.f32 0.0, %v558
        %v560 = vpop.f32.mrb[0].mxu0
        %v561 = vpop.f32.mrb[0].mxu0
        %562 = vdwg.mxu0
        %v563 = vadd.f32 %v316, %v516
        %v564 = vadd.f32 %v317, %v518
        %v565 = vadd.f32 %v318, %v557
        %v566 = vadd.f32 %v319, %v559
        %v567 = vxor.u32 %v563, 2147483648
        %v568 = vmul.f32 %v567, 1.442695
        %v569 = vpow.pop %v568
        %v570 = vadd.f32 %v569, 1.0
        %v571 = vrcp.pop %v570
        %v572 = vmul.f32 1.0, %v571
        %v573 = vxor.u32 %v564, 2147483648
        %v574 = vmul.f32 %v573, 1.442695
        %v575 = vpow.pop %v574
        %v576 = vadd.f32 %v575, 1.0
        %v577 = vrcp.pop %v576
        %v578 = vmul.f32 1.0, %v577
        %v579 = vtanh.pop %v565
        %v580 = vxor.u32 %v566, 2147483648
        %v581 = vmul.f32 %v580, 1.442695
        %v582 = vpow.pop %v581
        %v583 = vadd.f32 %v582, 1.0
        %v584 = vrcp.pop %v583
        %v585 = vmul.f32 1.0, %v584
        %v586 = vmul.f32 %v578, %v315
        %v587 = vmul.f32 %v572, %v579
        %v588 = vadd.f32 %v586, %v587
        %v589 = vtanh.pop %v588
        %v590 = vmul.f32 %v585, %v589
        %v591 = vstv %s313
        %vm592 = vcmp.lt.s32.totalorder %v591, %v280
        %v593 = vsel %vm592, 1, 0
        %594 = vset.pattern.permute.xlu0 0
        %595 = vperm.xlu0 %594, %v593
        %v596 = vpop.permute.xlu0 %595
        %vm597 = vcmp.eq.s32.totalorder %v596, 1
        %v598 = vsel %vm597, %v590, %v314
        %599 = vst [vmem:[#allocation2] sm:$0xff] %v598
        %v600 = vsel %vm597, %v588, %v315
        %601 = vst [vmem:[#allocation3] sm:$0xff] %v600
        %v602 = vsel %vm597, %v590, 0.0
        %603 = vst [vmem:[%s264] sm:$0xff] %v602
        %s604 = sadd.s32 %s313, 1
        %v605 = vld [vmem:[#allocation2] sm:$0xff]
        %v606 = vld [vmem:[#allocation3] sm:$0xff]
        %s607 = scalar_lea.vmem %s234, 32 [#allocation4]
        %v608 = vld [vmem:[%s607] sm:$0xff]
        %v609 = vld [vmem:[%s607 + $0x8] sm:$0xff]
        %v610 = vld [vmem:[%s607 + $0x10] sm:$0xff]
        %v611 = vld [vmem:[%s607 + $0x18] sm:$0xff]
        %v612 = vpack.c.bf16 %v605, %v605
        %613 = vmatprep.subr.bf16.mxu0 %v418
        %614 = vmatpush1.bf16.msra.mxu0 %v417
        %615 = vmatprep.subr.bf16.mxu0 %v422
        %616 = vmatpush1.bf16.msra.mxu0 %v421
        %617 = vmatprep.subr.bf16.mxu0 %v426
        %618 = vmatpush1.bf16.msra.mxu0 %v425
        %619 = vmatprep.subr.bf16.mxu0 %v430
        %620 = vmatpush1.bf16.msra.mxu0 %v429
        %621 = vmatprep.subr.bf16.mxu0 %v434
        %622 = vmatpush1.bf16.msra.mxu0 %v433
        %623 = vmatprep.subr.bf16.mxu0 %v438
        %624 = vmatpush1.bf16.msra.mxu0 %v437
        %625 = vmatprep.subr.bf16.mxu0 %v442
        %626 = vmatpush1.bf16.msra.mxu0 %v441
        %627 = vmatprep.subr.bf16.mxu0 %v446
        %628 = vmatpush1.bf16.msra.mxu0 %v445
        %629 = vmatprep.subr.bf16.mxu0 0
        %630 = vmatpush1.bf16.msra.mxu0 0
        %631 = vmatprep.subr.bf16.mxu0 0
        %632 = vmatpush1.bf16.msra.mxu0 0
        %633 = vmatprep.subr.bf16.mxu0 0
        %634 = vmatpush1.bf16.msra.mxu0 0
        %635 = vmatprep.subr.bf16.mxu0 0
        %636 = vmatpush1.bf16.msra.mxu0 0
        %637 = vmatprep.subr.bf16.mxu0 0
        %638 = vmatpush1.bf16.msra.mxu0 0
        %639 = vmatprep.subr.bf16.mxu0 0
        %640 = vmatpush1.bf16.msra.mxu0 0
        %641 = vmatprep.subr.bf16.mxu0 0
        %642 = vmatpush1.bf16.msra.mxu0 0
        %643 = vmatprep.subr.bf16.mxu0 0
        %644 = vmatpush1.bf16.msra.mxu0 0
        %645 = vmatprep.mubr.bf16.mxu0 0
        %646 = vmatmul.mubr.bf16.gmra.mrb[0].mxu0 %v612
        %v647 = vpop.f32.mrb[0].mxu0
        %v648 = vadd.f32 0.0, %v647
        %v649 = vpop.f32.mrb[0].mxu0
        %v650 = vadd.f32 0.0, %v649
        %v651 = vpop.f32.mrb[0].mxu0
        %v652 = vpop.f32.mrb[0].mxu0
        %653 = vdwg.mxu0
        %654 = vmatprep.subr.bf16.mxu0 %v420
        %655 = vmatpush1.bf16.msra.mxu0 %v419
        %656 = vmatprep.subr.bf16.mxu0 %v424
        %657 = vmatpush1.bf16.msra.mxu0 %v423
        %658 = vmatprep.subr.bf16.mxu0 %v428
        %659 = vmatpush1.bf16.msra.mxu0 %v427
        %660 = vmatprep.subr.bf16.mxu0 %v432
        %661 = vmatpush1.bf16.msra.mxu0 %v431
        %662 = vmatprep.subr.bf16.mxu0 %v436
        %663 = vmatpush1.bf16.msra.mxu0 %v435
        %664 = vmatprep.subr.bf16.mxu0 %v440
        %665 = vmatpush1.bf16.msra.mxu0 %v439
        %666 = vmatprep.subr.bf16.mxu0 %v444
        %667 = vmatpush1.bf16.msra.mxu0 %v443
        %668 = vmatprep.subr.bf16.mxu0 %v448
        %669 = vmatpush1.bf16.msra.mxu0 %v447
        %670 = vmatprep.subr.bf16.mxu0 0
        %671 = vmatpush1.bf16.msra.mxu0 0
        %672 = vmatprep.subr.bf16.mxu0 0
        %673 = vmatpush1.bf16.msra.mxu0 0
        %674 = vmatprep.subr.bf16.mxu0 0
        %675 = vmatpush1.bf16.msra.mxu0 0
        %676 = vmatprep.subr.bf16.mxu0 0
        %677 = vmatpush1.bf16.msra.mxu0 0
        %678 = vmatprep.subr.bf16.mxu0 0
        %679 = vmatpush1.bf16.msra.mxu0 0
        %680 = vmatprep.subr.bf16.mxu0 0
        %681 = vmatpush1.bf16.msra.mxu0 0
        %682 = vmatprep.subr.bf16.mxu0 0
        %683 = vmatpush1.bf16.msra.mxu0 0
        %684 = vmatprep.subr.bf16.mxu0 0
        %685 = vmatpush1.bf16.msra.mxu0 0
        %686 = vmatprep.mubr.bf16.mxu0 0
        %687 = vmatmul.mubr.bf16.gmra.mrb[0].mxu0 %v612
        %v688 = vpop.f32.mrb[0].mxu0
        %v689 = vadd.f32 0.0, %v688
        %v690 = vpop.f32.mrb[0].mxu0
        %v691 = vadd.f32 0.0, %v690
        %v692 = vpop.f32.mrb[0].mxu0
        %v693 = vpop.f32.mrb[0].mxu0
        %694 = vdwg.mxu0
        %v695 = vadd.f32 %v608, %v648
        %v696 = vadd.f32 %v609, %v650
        %v697 = vadd.f32 %v610, %v689
        %v698 = vadd.f32 %v611, %v691
        %v699 = vxor.u32 %v695, 2147483648
        %v700 = vmul.f32 %v699, 1.442695
        %v701 = vpow.pop %v700
        %v702 = vadd.f32 %v701, 1.0
        %v703 = vrcp.pop %v702
        %v704 = vmul.f32 1.0, %v703
        %v705 = vxor.u32 %v696, 2147483648
        %v706 = vmul.f32 %v705, 1.442695
        %v707 = vpow.pop %v706
        %v708 = vadd.f32 %v707, 1.0
        %v709 = vrcp.pop %v708
        %v710 = vmul.f32 1.0, %v709
        %v711 = vtanh.pop %v697
        %v712 = vxor.u32 %v698, 2147483648
        %v713 = vmul.f32 %v712, 1.442695
        %v714 = vpow.pop %v713
        %v715 = vadd.f32 %v714, 1.0
        %v716 = vrcp.pop %v715
        %v717 = vmul.f32 1.0, %v716
        %v718 = vmul.f32 %v710, %v606
        %v719 = vmul.f32 %v704, %v711
        %v720 = vadd.f32 %v718, %v719
        %v721 = vtanh.pop %v720
        %v722 = vmul.f32 %v717, %v721
        %v723 = vstv %s604
        %vm724 = vcmp.lt.s32.totalorder %v723, %v280
        %v725 = vsel %vm724, 1, 0
        %726 = vset.pattern.permute.xlu0 0
        %727 = vperm.xlu0 %726, %v725
        %v728 = vpop.permute.xlu0 %727
        %vm729 = vcmp.eq.s32.totalorder %v728, 1
        %v730 = vsel %vm729, %v722, %v605
        %731 = vst [vmem:[#allocation2] sm:$0xff] %v730
        %v732 = vsel %vm729, %v720, %v606
        %733 = vst [vmem:[#allocation3] sm:$0xff] %v732
        %v734 = vsel %vm729, %v722, 0.0
        %s735 = scalar_lea.vmem %s264, 8 [#allocation9]
        %736 = vst [vmem:[%s735] sm:$0xff] %v734
        %s737 = sadd.s32 %s313, 2
        %v738 = vld [vmem:[#allocation2] sm:$0xff]
        %v739 = vld [vmem:[#allocation3] sm:$0xff]
        %s740 = scalar_lea.vmem %s234, 64 [#allocation4]
        %v741 = vld [vmem:[%s740] sm:$0xff]
        %v742 = vld [vmem:[%s740 + $0x8] sm:$0xff]
        %v743 = vld [vmem:[%s740 + $0x10] sm:$0xff]
        %v744 = vld [vmem:[%s740 + $0x18] sm:$0xff]
        %v745 = vpack.c.bf16 %v738, %v738
        %746 = vmatprep.subr.bf16.mxu0 %v418
        %747 = vmatpush1.bf16.msra.mxu0 %v417
        %748 = vmatprep.subr.bf16.mxu0 %v422
        %749 = vmatpush1.bf16.msra.mxu0 %v421
        %750 = vmatprep.subr.bf16.mxu0 %v426
        %751 = vmatpush1.bf16.msra.mxu0 %v425
        %752 = vmatprep.subr.bf16.mxu0 %v430
        %753 = vmatpush1.bf16.msra.mxu0 %v429
        %754 = vmatprep.subr.bf16.mxu0 %v434
        %755 = vmatpush1.bf16.msra.mxu0 %v433
        %756 = vmatprep.subr.bf16.mxu0 %v438
        %757 = vmatpush1.bf16.msra.mxu0 %v437
        %758 = vmatprep.subr.bf16.mxu0 %v442
        %759 = vmatpush1.bf16.msra.mxu0 %v441
        %760 = vmatprep.subr.bf16.mxu0 %v446
        %761 = vmatpush1.bf16.msra.mxu0 %v445
        %762 = vmatprep.subr.bf16.mxu0 0
        %763 = vmatpush1.bf16.msra.mxu0 0
        %764 = vmatprep.subr.bf16.mxu0 0
        %765 = vmatpush1.bf16.msra.mxu0 0
        %766 = vmatprep.subr.bf16.mxu0 0
        %767 = vmatpush1.bf16.msra.mxu0 0
        %768 = vmatprep.subr.bf16.mxu0 0
        %769 = vmatpush1.bf16.msra.mxu0 0
        %770 = vmatprep.subr.bf16.mxu0 0
        %771 = vmatpush1.bf16.msra.mxu0 0
        %772 = vmatprep.subr.bf16.mxu0 0
        %773 = vmatpush1.bf16.msra.mxu0 0
        %774 = vmatprep.subr.bf16.mxu0 0
        %775 = vmatpush1.bf16.msra.mxu0 0
        %776 = vmatprep.subr.bf16.mxu0 0
        %777 = vmatpush1.bf16.msra.mxu0 0
        %778 = vmatprep.mubr.bf16.mxu0 0
        %779 = vmatmul.mubr.bf16.gmra.mrb[0].mxu0 %v745
        %v780 = vpop.f32.mrb[0].mxu0
        %v781 = vadd.f32 0.0, %v780
        %v782 = vpop.f32.mrb[0].mxu0
        %v783 = vadd.f32 0.0, %v782
        %v784 = vpop.f32.mrb[0].mxu0
        %v785 = vpop.f32.mrb[0].mxu0
        %786 = vdwg.mxu0
        %787 = vmatprep.subr.bf16.mxu0 %v420
        %788 = vmatpush1.bf16.msra.mxu0 %v419
        %789 = vmatprep.subr.bf16.mxu0 %v424
        %790 = vmatpush1.bf16.msra.mxu0 %v423
        %791 = vmatprep.subr.bf16.mxu0 %v428
        %792 = vmatpush1.bf16.msra.mxu0 %v427
        %793 = vmatprep.subr.bf16.mxu0 %v432
        %794 = vmatpush1.bf16.msra.mxu0 %v431
        %795 = vmatprep.subr.bf16.mxu0 %v436
        %796 = vmatpush1.bf16.msra.mxu0 %v435
        %797 = vmatprep.subr.bf16.mxu0 %v440
        %798 = vmatpush1.bf16.msra.mxu0 %v439
        %799 = vmatprep.subr.bf16.mxu0 %v444
        %800 = vmatpush1.bf16.msra.mxu0 %v443
        %801 = vmatprep.subr.bf16.mxu0 %v448
        %802 = vmatpush1.bf16.msra.mxu0 %v447
        %803 = vmatprep.subr.bf16.mxu0 0
        %804 = vmatpush1.bf16.msra.mxu0 0
        %805 = vmatprep.subr.bf16.mxu0 0
        %806 = vmatpush1.bf16.msra.mxu0 0
        %807 = vmatprep.subr.bf16.mxu0 0
        %808 = vmatpush1.bf16.msra.mxu0 0
        %809 = vmatprep.subr.bf16.mxu0 0
        %810 = vmatpush1.bf16.msra.mxu0 0
        %811 = vmatprep.subr.bf16.mxu0 0
        %812 = vmatpush1.bf16.msra.mxu0 0
        %813 = vmatprep.subr.bf16.mxu0 0
        %814 = vmatpush1.bf16.msra.mxu0 0
        %815 = vmatprep.subr.bf16.mxu0 0
        %816 = vmatpush1.bf16.msra.mxu0 0
        %817 = vmatprep.subr.bf16.mxu0 0
        %818 = vmatpush1.bf16.msra.mxu0 0
        %819 = vmatprep.mubr.bf16.mxu0 0
        %820 = vmatmul.mubr.bf16.gmra.mrb[0].mxu0 %v745
        %v821 = vpop.f32.mrb[0].mxu0
        %v822 = vadd.f32 0.0, %v821
        %v823 = vpop.f32.mrb[0].mxu0
        %v824 = vadd.f32 0.0, %v823
        %v825 = vpop.f32.mrb[0].mxu0
        %v826 = vpop.f32.mrb[0].mxu0
        %827 = vdwg.mxu0
        %v828 = vadd.f32 %v741, %v781
        %v829 = vadd.f32 %v742, %v783
        %v830 = vadd.f32 %v743, %v822
        %v831 = vadd.f32 %v744, %v824
        %v832 = vxor.u32 %v828, 2147483648
        %v833 = vmul.f32 %v832, 1.442695
        %v834 = vpow.pop %v833
        %v835 = vadd.f32 %v834, 1.0
        %v836 = vrcp.pop %v835
        %v837 = vmul.f32 1.0, %v836
        %v838 = vxor.u32 %v829, 2147483648
        %v839 = vmul.f32 %v838, 1.442695
        %v840 = vpow.pop %v839
        %v841 = vadd.f32 %v840, 1.0
        %v842 = vrcp.pop %v841
        %v843 = vmul.f32 1.0, %v842
        %v844 = vtanh.pop %v830
        %v845 = vxor.u32 %v831, 2147483648
        %v846 = vmul.f32 %v845, 1.442695
        %v847 = vpow.pop %v846
        %v848 = vadd.f32 %v847, 1.0
        %v849 = vrcp.pop %v848
        %v850 = vmul.f32 1.0, %v849
        %v851 = vmul.f32 %v843, %v739
        %v852 = vmul.f32 %v837, %v844
        %v853 = vadd.f32 %v851, %v852
        %v854 = vtanh.pop %v853
        %v855 = vmul.f32 %v850, %v854
        %v856 = vstv %s737
        %vm857 = vcmp.lt.s32.totalorder %v856, %v280
        %v858 = vsel %vm857, 1, 0
        %859 = vset.pattern.permute.xlu0 0
        %860 = vperm.xlu0 %859, %v858
        %v861 = vpop.permute.xlu0 %860
        %vm862 = vcmp.eq.s32.totalorder %v861, 1
        %v863 = vsel %vm862, %v855, %v738
        %864 = vst [vmem:[#allocation2] sm:$0xff] %v863
        %v865 = vsel %vm862, %v853, %v739
        %866 = vst [vmem:[#allocation3] sm:$0xff] %v865
        %v867 = vsel %vm862, %v855, 0.0
        %s868 = scalar_lea.vmem %s264, 16 [#allocation9]
        %869 = vst [vmem:[%s868] sm:$0xff] %v867
        %s870 = sadd.s32 %s313, 3
        %v871 = vld [vmem:[#allocation2] sm:$0xff]
        %v872 = vld [vmem:[#allocation3] sm:$0xff]
        %s873 = scalar_lea.vmem %s234, 96 [#allocation4]
        %v874 = vld [vmem:[%s873] sm:$0xff]
        %v875 = vld [vmem:[%s873 + $0x8] sm:$0xff]
        %v876 = vld [vmem:[%s873 + $0x10] sm:$0xff]
        %v877 = vld [vmem:[%s873 + $0x18] sm:$0xff]
        %v878 = vpack.c.bf16 %v871, %v871
        %879 = vmatprep.subr.bf16.mxu0 %v418
        %880 = vmatpush1.bf16.msra.mxu0 %v417
        %881 = vmatprep.subr.bf16.mxu0 %v422
        %882 = vmatpush1.bf16.msra.mxu0 %v421
        %883 = vmatprep.subr.bf16.mxu0 %v426
        %884 = vmatpush1.bf16.msra.mxu0 %v425
        %885 = vmatprep.subr.bf16.mxu0 %v430
        %886 = vmatpush1.bf16.msra.mxu0 %v429
        %887 = vmatprep.subr.bf16.mxu0 %v434
        %888 = vmatpush1.bf16.msra.mxu0 %v433
        %889 = vmatprep.subr.bf16.mxu0 %v438
        %890 = vmatpush1.bf16.msra.mxu0 %v437
        %891 = vmatprep.subr.bf16.mxu0 %v442
        %892 = vmatpush1.bf16.msra.mxu0 %v441
        %893 = vmatprep.subr.bf16.mxu0 %v446
        %894 = vmatpush1.bf16.msra.mxu0 %v445
        %895 = vmatprep.subr.bf16.mxu0 0
        %896 = vmatpush1.bf16.msra.mxu0 0
        %897 = vmatprep.subr.bf16.mxu0 0
        %898 = vmatpush1.bf16.msra.mxu0 0
        %899 = vmatprep.subr.bf16.mxu0 0
        %900 = vmatpush1.bf16.msra.mxu0 0
        %901 = vmatprep.subr.bf16.mxu0 0
        %902 = vmatpush1.bf16.msra.mxu0 0
        %903 = vmatprep.subr.bf16.mxu0 0
        %904 = vmatpush1.bf16.msra.mxu0 0
        %905 = vmatprep.subr.bf16.mxu0 0
        %906 = vmatpush1.bf16.msra.mxu0 0
        %907 = vmatprep.subr.bf16.mxu0 0
        %908 = vmatpush1.bf16.msra.mxu0 0
        %909 = vmatprep.subr.bf16.mxu0 0
        %910 = vmatpush1.bf16.msra.mxu0 0
        %911 = vmatprep.mubr.bf16.mxu0 0
        %912 = vmatmul.mubr.bf16.gmra.mrb[0].mxu0 %v878
        %v913 = vpop.f32.mrb[0].mxu0
        %v914 = vadd.f32 0.0, %v913
        %v915 = vpop.f32.mrb[0].mxu0
        %v916 = vadd.f32 0.0, %v915
        %v917 = vpop.f32.mrb[0].mxu0
        %v918 = vpop.f32.mrb[0].mxu0
        %919 = vdwg.mxu0
        %920 = vmatprep.subr.bf16.mxu0 %v420
        %921 = vmatpush1.bf16.msra.mxu0 %v419
        %922 = vmatprep.subr.bf16.mxu0 %v424
        %923 = vmatpush1.bf16.msra.mxu0 %v423
        %924 = vmatprep.subr.bf16.mxu0 %v428
        %925 = vmatpush1.bf16.msra.mxu0 %v427
        %926 = vmatprep.subr.bf16.mxu0 %v432
        %927 = vmatpush1.bf16.msra.mxu0 %v431
        %928 = vmatprep.subr.bf16.mxu0 %v436
        %929 = vmatpush1.bf16.msra.mxu0 %v435
        %930 = vmatprep.subr.bf16.mxu0 %v440
        %931 = vmatpush1.bf16.msra.mxu0 %v439
        %932 = vmatprep.subr.bf16.mxu0 %v444
        %933 = vmatpush1.bf16.msra.mxu0 %v443
        %934 = vmatprep.subr.bf16.mxu0 %v448
        %935 = vmatpush1.bf16.msra.mxu0 %v447
        %936 = vmatprep.subr.bf16.mxu0 0
        %937 = vmatpush1.bf16.msra.mxu0 0
        %938 = vmatprep.subr.bf16.mxu0 0
        %939 = vmatpush1.bf16.msra.mxu0 0
        %940 = vmatprep.subr.bf16.mxu0 0
        %941 = vmatpush1.bf16.msra.mxu0 0
        %942 = vmatprep.subr.bf16.mxu0 0
        %943 = vmatpush1.bf16.msra.mxu0 0
        %944 = vmatprep.subr.bf16.mxu0 0
        %945 = vmatpush1.bf16.msra.mxu0 0
        %946 = vmatprep.subr.bf16.mxu0 0
        %947 = vmatpush1.bf16.msra.mxu0 0
        %948 = vmatprep.subr.bf16.mxu0 0
        %949 = vmatpush1.bf16.msra.mxu0 0
        %950 = vmatprep.subr.bf16.mxu0 0
        %951 = vmatpush1.bf16.msra.mxu0 0
        %952 = vmatprep.mubr.bf16.mxu0 0
        %953 = vmatmul.mubr.bf16.gmra.mrb[0].mxu0 %v878
        %v954 = vpop.f32.mrb[0].mxu0
        %v955 = vadd.f32 0.0, %v954
        %v956 = vpop.f32.mrb[0].mxu0
        %v957 = vadd.f32 0.0, %v956
        %v958 = vpop.f32.mrb[0].mxu0
        %v959 = vpop.f32.mrb[0].mxu0
        %960 = vdwg.mxu0
        %v961 = vadd.f32 %v874, %v914
        %v962 = vadd.f32 %v875, %v916
        %v963 = vadd.f32 %v876, %v955
        %v964 = vadd.f32 %v877, %v957
        %v965 = vxor.u32 %v961, 2147483648
        %v966 = vmul.f32 %v965, 1.442695
        %v967 = vpow.pop %v966
        %v968 = vadd.f32 %v967, 1.0
        %v969 = vrcp.pop %v968
        %v970 = vmul.f32 1.0, %v969
        %v971 = vxor.u32 %v962, 2147483648
        %v972 = vmul.f32 %v971, 1.442695
        %v973 = vpow.pop %v972
        %v974 = vadd.f32 %v973, 1.0
        %v975 = vrcp.pop %v974
        %v976 = vmul.f32 1.0, %v975
        %v977 = vtanh.pop %v963
        %v978 = vxor.u32 %v964, 2147483648
        %v979 = vmul.f32 %v978, 1.442695
        %v980 = vpow.pop %v979
        %v981 = vadd.f32 %v980, 1.0
        %v982 = vrcp.pop %v981
        %v983 = vmul.f32 1.0, %v982
        %v984 = vmul.f32 %v976, %v872
        %v985 = vmul.f32 %v970, %v977
        %v986 = vadd.f32 %v984, %v985
        %v987 = vtanh.pop %v986
        %v988 = vmul.f32 %v983, %v987
        %v989 = vstv %s870
        %vm990 = vcmp.lt.s32.totalorder %v989, %v280
        %v991 = vsel %vm990, 1, 0
        %992 = vset.pattern.permute.xlu0 0
        %993 = vperm.xlu0 %992, %v991
        %v994 = vpop.permute.xlu0 %993
        %vm995 = vcmp.eq.s32.totalorder %v994, 1
        %v996 = vsel %vm995, %v988, %v871
        %997 = vst [vmem:[#allocation2] sm:$0xff] %v996
        %v998 = vsel %vm995, %v986, %v872
        %999 = vst [vmem:[#allocation3] sm:$0xff] %v998
        %v1000 = vsel %vm995, %v988, 0.0
        %s1001 = scalar_lea.vmem %s264, 24 [#allocation9]
        %1002 = vst [vmem:[%s1001] sm:$0xff] %v1000
        %s1003 = sadd.s32 %s313, 4
        %v1004 = vld [vmem:[#allocation2] sm:$0xff]
        %v1005 = vld [vmem:[#allocation3] sm:$0xff]
        %s1006 = scalar_lea.vmem %s234, 128 [#allocation4]
        %v1007 = vld [vmem:[%s1006] sm:$0xff]
        %v1008 = vld [vmem:[%s1006 + $0x8] sm:$0xff]
        %v1009 = vld [vmem:[%s1006 + $0x10] sm:$0xff]
        %v1010 = vld [vmem:[%s1006 + $0x18] sm:$0xff]
        %v1011 = vpack.c.bf16 %v1004, %v1004
        %1012 = vmatprep.subr.bf16.mxu0 %v418
        %1013 = vmatpush1.bf16.msra.mxu0 %v417
        %1014 = vmatprep.subr.bf16.mxu0 %v422
        %1015 = vmatpush1.bf16.msra.mxu0 %v421
        %1016 = vmatprep.subr.bf16.mxu0 %v426
        %1017 = vmatpush1.bf16.msra.mxu0 %v425
        %1018 = vmatprep.subr.bf16.mxu0 %v430
        %1019 = vmatpush1.bf16.msra.mxu0 %v429
        %1020 = vmatprep.subr.bf16.mxu0 %v434
        %1021 = vmatpush1.bf16.msra.mxu0 %v433
        %1022 = vmatprep.subr.bf16.mxu0 %v438
        %1023 = vmatpush1.bf16.msra.mxu0 %v437
        %1024 = vmatprep.subr.bf16.mxu0 %v442
        %1025 = vmatpush1.bf16.msra.mxu0 %v441
        %1026 = vmatprep.subr.bf16.mxu0 %v446
        %1027 = vmatpush1.bf16.msra.mxu0 %v445
        %1028 = vmatprep.subr.bf16.mxu0 0
        %1029 = vmatpush1.bf16.msra.mxu0 0
        %1030 = vmatprep.subr.bf16.mxu0 0
        %1031 = vmatpush1.bf16.msra.mxu0 0
        %1032 = vmatprep.subr.bf16.mxu0 0
        %1033 = vmatpush1.bf16.msra.mxu0 0
        %1034 = vmatprep.subr.bf16.mxu0 0
        %1035 = vmatpush1.bf16.msra.mxu0 0
        %1036 = vmatprep.subr.bf16.mxu0 0
        %1037 = vmatpush1.bf16.msra.mxu0 0
        %1038 = vmatprep.subr.bf16.mxu0 0
        %1039 = vmatpush1.bf16.msra.mxu0 0
        %1040 = vmatprep.subr.bf16.mxu0 0
        %1041 = vmatpush1.bf16.msra.mxu0 0
        %1042 = vmatprep.subr.bf16.mxu0 0
        %1043 = vmatpush1.bf16.msra.mxu0 0
        %1044 = vmatprep.mubr.bf16.mxu0 0
        %1045 = vmatmul.mubr.bf16.gmra.mrb[0].mxu0 %v1011
        %v1046 = vpop.f32.mrb[0].mxu0
        %v1047 = vadd.f32 0.0, %v1046
        %v1048 = vpop.f32.mrb[0].mxu0
        %v1049 = vadd.f32 0.0, %v1048
        %v1050 = vpop.f32.mrb[0].mxu0
        %v1051 = vpop.f32.mrb[0].mxu0
        %1052 = vdwg.mxu0
        %1053 = vmatprep.subr.bf16.mxu0 %v420
        %1054 = vmatpush1.bf16.msra.mxu0 %v419
        %1055 = vmatprep.subr.bf16.mxu0 %v424
        %1056 = vmatpush1.bf16.msra.mxu0 %v423
        %1057 = vmatprep.subr.bf16.mxu0 %v428
        %1058 = vmatpush1.bf16.msra.mxu0 %v427
        %1059 = vmatprep.subr.bf16.mxu0 %v432
        %1060 = vmatpush1.bf16.msra.mxu0 %v431
        %1061 = vmatprep.subr.bf16.mxu0 %v436
        %1062 = vmatpush1.bf16.msra.mxu0 %v435
        %1063 = vmatprep.subr.bf16.mxu0 %v440
        %1064 = vmatpush1.bf16.msra.mxu0 %v439
        %1065 = vmatprep.subr.bf16.mxu0 %v444
        %1066 = vmatpush1.bf16.msra.mxu0 %v443
        %1067 = vmatprep.subr.bf16.mxu0 %v448
        %1068 = vmatpush1.bf16.msra.mxu0 %v447
        %1069 = vmatprep.subr.bf16.mxu0 0
        %1070 = vmatpush1.bf16.msra.mxu0 0
        %1071 = vmatprep.subr.bf16.mxu0 0
        %1072 = vmatpush1.bf16.msra.mxu0 0
        %1073 = vmatprep.subr.bf16.mxu0 0
        %1074 = vmatpush1.bf16.msra.mxu0 0
        %1075 = vmatprep.subr.bf16.mxu0 0
        %1076 = vmatpush1.bf16.msra.mxu0 0
        %1077 = vmatprep.subr.bf16.mxu0 0
        %1078 = vmatpush1.bf16.msra.mxu0 0
        %1079 = vmatprep.subr.bf16.mxu0 0
        %1080 = vmatpush1.bf16.msra.mxu0 0
        %1081 = vmatprep.subr.bf16.mxu0 0
        %1082 = vmatpush1.bf16.msra.mxu0 0
        %1083 = vmatprep.subr.bf16.mxu0 0
        %1084 = vmatpush1.bf16.msra.mxu0 0
        %1085 = vmatprep.mubr.bf16.mxu0 0
        %1086 = vmatmul.mubr.bf16.gmra.mrb[0].mxu0 %v1011
        %v1087 = vpop.f32.mrb[0].mxu0
        %v1088 = vadd.f32 0.0, %v1087
        %v1089 = vpop.f32.mrb[0].mxu0
        %v1090 = vadd.f32 0.0, %v1089
        %v1091 = vpop.f32.mrb[0].mxu0
        %v1092 = vpop.f32.mrb[0].mxu0
        %1093 = vdwg.mxu0
        %v1094 = vadd.f32 %v1007, %v1047
        %v1095 = vadd.f32 %v1008, %v1049
        %v1096 = vadd.f32 %v1009, %v1088
        %v1097 = vadd.f32 %v1010, %v1090
        %v1098 = vxor.u32 %v1094, 2147483648
        %v1099 = vmul.f32 %v1098, 1.442695
        %v1100 = vpow.pop %v1099
        %v1101 = vadd.f32 %v1100, 1.0
        %v1102 = vrcp.pop %v1101
        %v1103 = vmul.f32 1.0, %v1102
        %v1104 = vxor.u32 %v1095, 2147483648
        %v1105 = vmul.f32 %v1104, 1.442695
        %v1106 = vpow.pop %v1105
        %v1107 = vadd.f32 %v1106, 1.0
        %v1108 = vrcp.pop %v1107
        %v1109 = vmul.f32 1.0, %v1108
        %v1110 = vtanh.pop %v1096
        %v1111 = vxor.u32 %v1097, 2147483648
        %v1112 = vmul.f32 %v1111, 1.442695
        %v1113 = vpow.pop %v1112
        %v1114 = vadd.f32 %v1113, 1.0
        %v1115 = vrcp.pop %v1114
        %v1116 = vmul.f32 1.0, %v1115
        %v1117 = vmul.f32 %v1109, %v1005
        %v1118 = vmul.f32 %v1103, %v1110
        %v1119 = vadd.f32 %v1117, %v1118
        %v1120 = vtanh.pop %v1119
        %v1121 = vmul.f32 %v1116, %v1120
        %v1122 = vstv %s1003
        %vm1123 = vcmp.lt.s32.totalorder %v1122, %v280
        %v1124 = vsel %vm1123, 1, 0
        %1125 = vset.pattern.permute.xlu0 0
        %1126 = vperm.xlu0 %1125, %v1124
        %v1127 = vpop.permute.xlu0 %1126
        %vm1128 = vcmp.eq.s32.totalorder %v1127, 1
        %v1129 = vsel %vm1128, %v1121, %v1004
        %1130 = vst [vmem:[#allocation2] sm:$0xff] %v1129
        %v1131 = vsel %vm1128, %v1119, %v1005
        %1132 = vst [vmem:[#allocation3] sm:$0xff] %v1131
        %v1133 = vsel %vm1128, %v1121, 0.0
        %s1134 = scalar_lea.vmem %s264, 32 [#allocation9]
        %1135 = vst [vmem:[%s1134] sm:$0xff] %v1133
        %s1136 = sadd.s32 %s313, 5
        %v1137 = vld [vmem:[#allocation2] sm:$0xff]
        %v1138 = vld [vmem:[#allocation3] sm:$0xff]
        %s1139 = scalar_lea.vmem %s234, 160 [#allocation4]
        %v1140 = vld [vmem:[%s1139] sm:$0xff]
        %v1141 = vld [vmem:[%s1139 + $0x8] sm:$0xff]
        %v1142 = vld [vmem:[%s1139 + $0x10] sm:$0xff]
        %v1143 = vld [vmem:[%s1139 + $0x18] sm:$0xff]
        %v1144 = vpack.c.bf16 %v1137, %v1137
        %1145 = vmatprep.subr.bf16.mxu0 %v418
        %1146 = vmatpush1.bf16.msra.mxu0 %v417
        %1147 = vmatprep.subr.bf16.mxu0 %v422
        %1148 = vmatpush1.bf16.msra.mxu0 %v421
        %1149 = vmatprep.subr.bf16.mxu0 %v426
        %1150 = vmatpush1.bf16.msra.mxu0 %v425
        %1151 = vmatprep.subr.bf16.mxu0 %v430
        %1152 = vmatpush1.bf16.msra.mxu0 %v429
        %1153 = vmatprep.subr.bf16.mxu0 %v434
        %1154 = vmatpush1.bf16.msra.mxu0 %v433
        %1155 = vmatprep.subr.bf16.mxu0 %v438
        %1156 = vmatpush1.bf16.msra.mxu0 %v437
        %1157 = vmatprep.subr.bf16.mxu0 %v442
        %1158 = vmatpush1.bf16.msra.mxu0 %v441
        %1159 = vmatprep.subr.bf16.mxu0 %v446
        %1160 = vmatpush1.bf16.msra.mxu0 %v445
        %1161 = vmatprep.subr.bf16.mxu0 0
        %1162 = vmatpush1.bf16.msra.mxu0 0
        %1163 = vmatprep.subr.bf16.mxu0 0
        %1164 = vmatpush1.bf16.msra.mxu0 0
        %1165 = vmatprep.subr.bf16.mxu0 0
        %1166 = vmatpush1.bf16.msra.mxu0 0
        %1167 = vmatprep.subr.bf16.mxu0 0
        %1168 = vmatpush1.bf16.msra.mxu0 0
        %1169 = vmatprep.subr.bf16.mxu0 0
        %1170 = vmatpush1.bf16.msra.mxu0 0
        %1171 = vmatprep.subr.bf16.mxu0 0
        %1172 = vmatpush1.bf16.msra.mxu0 0
        %1173 = vmatprep.subr.bf16.mxu0 0
        %1174 = vmatpush1.bf16.msra.mxu0 0
        %1175 = vmatprep.subr.bf16.mxu0 0
        %1176 = vmatpush1.bf16.msra.mxu0 0
        %1177 = vmatprep.mubr.bf16.mxu0 0
        %1178 = vmatmul.mubr.bf16.gmra.mrb[0].mxu0 %v1144
        %v1179 = vpop.f32.mrb[0].mxu0
        %v1180 = vadd.f32 0.0, %v1179
        %v1181 = vpop.f32.mrb[0].mxu0
        %v1182 = vadd.f32 0.0, %v1181
        %v1183 = vpop.f32.mrb[0].mxu0
        %v1184 = vpop.f32.mrb[0].mxu0
        %1185 = vdwg.mxu0
        %1186 = vmatprep.subr.bf16.mxu0 %v420
        %1187 = vmatpush1.bf16.msra.mxu0 %v419
        %1188 = vmatprep.subr.bf16.mxu0 %v424
        %1189 = vmatpush1.bf16.msra.mxu0 %v423
        %1190 = vmatprep.subr.bf16.mxu0 %v428
        %1191 = vmatpush1.bf16.msra.mxu0 %v427
        %1192 = vmatprep.subr.bf16.mxu0 %v432
        %1193 = vmatpush1.bf16.msra.mxu0 %v431
        %1194 = vmatprep.subr.bf16.mxu0 %v436
        %1195 = vmatpush1.bf16.msra.mxu0 %v435
        %1196 = vmatprep.subr.bf16.mxu0 %v440
        %1197 = vmatpush1.bf16.msra.mxu0 %v439
        %1198 = vmatprep.subr.bf16.mxu0 %v444
        %1199 = vmatpush1.bf16.msra.mxu0 %v443
        %1200 = vmatprep.subr.bf16.mxu0 %v448
        %1201 = vmatpush1.bf16.msra.mxu0 %v447
        %1202 = vmatprep.subr.bf16.mxu0 0
        %1203 = vmatpush1.bf16.msra.mxu0 0
        %1204 = vmatprep.subr.bf16.mxu0 0
        %1205 = vmatpush1.bf16.msra.mxu0 0
        %1206 = vmatprep.subr.bf16.mxu0 0
        %1207 = vmatpush1.bf16.msra.mxu0 0
        %1208 = vmatprep.subr.bf16.mxu0 0
        %1209 = vmatpush1.bf16.msra.mxu0 0
        %1210 = vmatprep.subr.bf16.mxu0 0
        %1211 = vmatpush1.bf16.msra.mxu0 0
        %1212 = vmatprep.subr.bf16.mxu0 0
        %1213 = vmatpush1.bf16.msra.mxu0 0
        %1214 = vmatprep.subr.bf16.mxu0 0
        %1215 = vmatpush1.bf16.msra.mxu0 0
        %1216 = vmatprep.subr.bf16.mxu0 0
        %1217 = vmatpush1.bf16.msra.mxu0 0
        %1218 = vmatprep.mubr.bf16.mxu0 0
        %1219 = vmatmul.mubr.bf16.gmra.mrb[0].mxu0 %v1144
        %v1220 = vpop.f32.mrb[0].mxu0
        %v1221 = vadd.f32 0.0, %v1220
        %v1222 = vpop.f32.mrb[0].mxu0
        %v1223 = vadd.f32 0.0, %v1222
        %v1224 = vpop.f32.mrb[0].mxu0
        %v1225 = vpop.f32.mrb[0].mxu0
        %1226 = vdwg.mxu0
        %v1227 = vadd.f32 %v1140, %v1180
        %v1228 = vadd.f32 %v1141, %v1182
        %v1229 = vadd.f32 %v1142, %v1221
        %v1230 = vadd.f32 %v1143, %v1223
        %v1231 = vxor.u32 %v1227, 2147483648
        %v1232 = vmul.f32 %v1231, 1.442695
        %v1233 = vpow.pop %v1232
        %v1234 = vadd.f32 %v1233, 1.0
        %v1235 = vrcp.pop %v1234
        %v1236 = vmul.f32 1.0, %v1235
        %v1237 = vxor.u32 %v1228, 2147483648
        %v1238 = vmul.f32 %v1237, 1.442695
        %v1239 = vpow.pop %v1238
        %v1240 = vadd.f32 %v1239, 1.0
        %v1241 = vrcp.pop %v1240
        %v1242 = vmul.f32 1.0, %v1241
        %v1243 = vtanh.pop %v1229
        %v1244 = vxor.u32 %v1230, 2147483648
        %v1245 = vmul.f32 %v1244, 1.442695
        %v1246 = vpow.pop %v1245
        %v1247 = vadd.f32 %v1246, 1.0
        %v1248 = vrcp.pop %v1247
        %v1249 = vmul.f32 1.0, %v1248
        %v1250 = vmul.f32 %v1242, %v1138
        %v1251 = vmul.f32 %v1236, %v1243
        %v1252 = vadd.f32 %v1250, %v1251
        %v1253 = vtanh.pop %v1252
        %v1254 = vmul.f32 %v1249, %v1253
        %v1255 = vstv %s1136
        %vm1256 = vcmp.lt.s32.totalorder %v1255, %v280
        %v1257 = vsel %vm1256, 1, 0
        %1258 = vset.pattern.permute.xlu0 0
        %1259 = vperm.xlu0 %1258, %v1257
        %v1260 = vpop.permute.xlu0 %1259
        %vm1261 = vcmp.eq.s32.totalorder %v1260, 1
        %v1262 = vsel %vm1261, %v1254, %v1137
        %1263 = vst [vmem:[#allocation2] sm:$0xff] %v1262
        %v1264 = vsel %vm1261, %v1252, %v1138
        %1265 = vst [vmem:[#allocation3] sm:$0xff] %v1264
        %v1266 = vsel %vm1261, %v1254, 0.0
        %s1267 = scalar_lea.vmem %s264, 40 [#allocation9]
        %1268 = vst [vmem:[%s1267] sm:$0xff] %v1266
        %s1269 = sadd.s32 %s313, 6
        %v1270 = vld [vmem:[#allocation2] sm:$0xff]
        %v1271 = vld [vmem:[#allocation3] sm:$0xff]
        %s1272 = scalar_lea.vmem %s234, 192 [#allocation4]
        %v1273 = vld [vmem:[%s1272] sm:$0xff]
        %v1274 = vld [vmem:[%s1272 + $0x8] sm:$0xff]
        %v1275 = vld [vmem:[%s1272 + $0x10] sm:$0xff]
        %v1276 = vld [vmem:[%s1272 + $0x18] sm:$0xff]
        %v1277 = vpack.c.bf16 %v1270, %v1270
        %1278 = vmatprep.subr.bf16.mxu0 %v418
        %1279 = vmatpush1.bf16.msra.mxu0 %v417
        %1280 = vmatprep.subr.bf16.mxu0 %v422
        %1281 = vmatpush1.bf16.msra.mxu0 %v421
        %1282 = vmatprep.subr.bf16.mxu0 %v426
        %1283 = vmatpush1.bf16.msra.mxu0 %v425
        %1284 = vmatprep.subr.bf16.mxu0 %v430
        %1285 = vmatpush1.bf16.msra.mxu0 %v429
        %1286 = vmatprep.subr.bf16.mxu0 %v434
        %1287 = vmatpush1.bf16.msra.mxu0 %v433
        %1288 = vmatprep.subr.bf16.mxu0 %v438
        %1289 = vmatpush1.bf16.msra.mxu0 %v437
        %1290 = vmatprep.subr.bf16.mxu0 %v442
        %1291 = vmatpush1.bf16.msra.mxu0 %v441
        %1292 = vmatprep.subr.bf16.mxu0 %v446
        %1293 = vmatpush1.bf16.msra.mxu0 %v445
        %1294 = vmatprep.subr.bf16.mxu0 0
        %1295 = vmatpush1.bf16.msra.mxu0 0
        %1296 = vmatprep.subr.bf16.mxu0 0
        %1297 = vmatpush1.bf16.msra.mxu0 0
        %1298 = vmatprep.subr.bf16.mxu0 0
        %1299 = vmatpush1.bf16.msra.mxu0 0
        %1300 = vmatprep.subr.bf16.mxu0 0
        %1301 = vmatpush1.bf16.msra.mxu0 0
        %1302 = vmatprep.subr.bf16.mxu0 0
        %1303 = vmatpush1.bf16.msra.mxu0 0
        %1304 = vmatprep.subr.bf16.mxu0 0
        %1305 = vmatpush1.bf16.msra.mxu0 0
        %1306 = vmatprep.subr.bf16.mxu0 0
        %1307 = vmatpush1.bf16.msra.mxu0 0
        %1308 = vmatprep.subr.bf16.mxu0 0
        %1309 = vmatpush1.bf16.msra.mxu0 0
        %1310 = vmatprep.mubr.bf16.mxu0 0
        %1311 = vmatmul.mubr.bf16.gmra.mrb[0].mxu0 %v1277
        %v1312 = vpop.f32.mrb[0].mxu0
        %v1313 = vadd.f32 0.0, %v1312
        %v1314 = vpop.f32.mrb[0].mxu0
        %v1315 = vadd.f32 0.0, %v1314
        %v1316 = vpop.f32.mrb[0].mxu0
        %v1317 = vpop.f32.mrb[0].mxu0
        %1318 = vdwg.mxu0
        %1319 = vmatprep.subr.bf16.mxu0 %v420
        %1320 = vmatpush1.bf16.msra.mxu0 %v419
        %1321 = vmatprep.subr.bf16.mxu0 %v424
        %1322 = vmatpush1.bf16.msra.mxu0 %v423
        %1323 = vmatprep.subr.bf16.mxu0 %v428
        %1324 = vmatpush1.bf16.msra.mxu0 %v427
        %1325 = vmatprep.subr.bf16.mxu0 %v432
        %1326 = vmatpush1.bf16.msra.mxu0 %v431
        %1327 = vmatprep.subr.bf16.mxu0 %v436
        %1328 = vmatpush1.bf16.msra.mxu0 %v435
        %1329 = vmatprep.subr.bf16.mxu0 %v440
        %1330 = vmatpush1.bf16.msra.mxu0 %v439
        %1331 = vmatprep.subr.bf16.mxu0 %v444
        %1332 = vmatpush1.bf16.msra.mxu0 %v443
        %1333 = vmatprep.subr.bf16.mxu0 %v448
        %1334 = vmatpush1.bf16.msra.mxu0 %v447
        %1335 = vmatprep.subr.bf16.mxu0 0
        %1336 = vmatpush1.bf16.msra.mxu0 0
        %1337 = vmatprep.subr.bf16.mxu0 0
        %1338 = vmatpush1.bf16.msra.mxu0 0
        %1339 = vmatprep.subr.bf16.mxu0 0
        %1340 = vmatpush1.bf16.msra.mxu0 0
        %1341 = vmatprep.subr.bf16.mxu0 0
        %1342 = vmatpush1.bf16.msra.mxu0 0
        %1343 = vmatprep.subr.bf16.mxu0 0
        %1344 = vmatpush1.bf16.msra.mxu0 0
        %1345 = vmatprep.subr.bf16.mxu0 0
        %1346 = vmatpush1.bf16.msra.mxu0 0
        %1347 = vmatprep.subr.bf16.mxu0 0
        %1348 = vmatpush1.bf16.msra.mxu0 0
        %1349 = vmatprep.subr.bf16.mxu0 0
        %1350 = vmatpush1.bf16.msra.mxu0 0
        %1351 = vmatprep.mubr.bf16.mxu0 0
        %1352 = vmatmul.mubr.bf16.gmra.mrb[0].mxu0 %v1277
        %v1353 = vpop.f32.mrb[0].mxu0
        %v1354 = vadd.f32 0.0, %v1353
        %v1355 = vpop.f32.mrb[0].mxu0
        %v1356 = vadd.f32 0.0, %v1355
        %v1357 = vpop.f32.mrb[0].mxu0
        %v1358 = vpop.f32.mrb[0].mxu0
        %1359 = vdwg.mxu0
        %v1360 = vadd.f32 %v1273, %v1313
        %v1361 = vadd.f32 %v1274, %v1315
        %v1362 = vadd.f32 %v1275, %v1354
        %v1363 = vadd.f32 %v1276, %v1356
        %v1364 = vxor.u32 %v1360, 2147483648
        %v1365 = vmul.f32 %v1364, 1.442695
        %v1366 = vpow.pop %v1365
        %v1367 = vadd.f32 %v1366, 1.0
        %v1368 = vrcp.pop %v1367
        %v1369 = vmul.f32 1.0, %v1368
        %v1370 = vxor.u32 %v1361, 2147483648
        %v1371 = vmul.f32 %v1370, 1.442695
        %v1372 = vpow.pop %v1371
        %v1373 = vadd.f32 %v1372, 1.0
        %v1374 = vrcp.pop %v1373
        %v1375 = vmul.f32 1.0, %v1374
        %v1376 = vtanh.pop %v1362
        %v1377 = vxor.u32 %v1363, 2147483648
        %v1378 = vmul.f32 %v1377, 1.442695
        %v1379 = vpow.pop %v1378
        %v1380 = vadd.f32 %v1379, 1.0
        %v1381 = vrcp.pop %v1380
        %v1382 = vmul.f32 1.0, %v1381
        %v1383 = vmul.f32 %v1375, %v1271
        %v1384 = vmul.f32 %v1369, %v1376
        %v1385 = vadd.f32 %v1383, %v1384
        %v1386 = vtanh.pop %v1385
        %v1387 = vmul.f32 %v1382, %v1386
        %v1388 = vstv %s1269
        %vm1389 = vcmp.lt.s32.totalorder %v1388, %v280
        %v1390 = vsel %vm1389, 1, 0
        %1391 = vset.pattern.permute.xlu0 0
        %1392 = vperm.xlu0 %1391, %v1390
        %v1393 = vpop.permute.xlu0 %1392
        %vm1394 = vcmp.eq.s32.totalorder %v1393, 1
        %v1395 = vsel %vm1394, %v1387, %v1270
        %1396 = vst [vmem:[#allocation2] sm:$0xff] %v1395
        %v1397 = vsel %vm1394, %v1385, %v1271
        %1398 = vst [vmem:[#allocation3] sm:$0xff] %v1397
        %v1399 = vsel %vm1394, %v1387, 0.0
        %s1400 = scalar_lea.vmem %s264, 48 [#allocation9]
        %1401 = vst [vmem:[%s1400] sm:$0xff] %v1399
        %s1402 = sadd.s32 %s313, 7
        %v1403 = vld [vmem:[#allocation2] sm:$0xff]
        %v1404 = vld [vmem:[#allocation3] sm:$0xff]
        %s1405 = scalar_lea.vmem %s234, 224 [#allocation4]
        %v1406 = vld [vmem:[%s1405] sm:$0xff]
        %v1407 = vld [vmem:[%s1405 + $0x8] sm:$0xff]
        %v1408 = vld [vmem:[%s1405 + $0x10] sm:$0xff]
        %v1409 = vld [vmem:[%s1405 + $0x18] sm:$0xff]
        %v1410 = vpack.c.bf16 %v1403, %v1403
        %1411 = vmatprep.subr.bf16.mxu0 %v418
        %1412 = vmatpush1.bf16.msra.mxu0 %v417
        %1413 = vmatprep.subr.bf16.mxu0 %v422
        %1414 = vmatpush1.bf16.msra.mxu0 %v421
        %1415 = vmatprep.subr.bf16.mxu0 %v426
        %1416 = vmatpush1.bf16.msra.mxu0 %v425
        %1417 = vmatprep.subr.bf16.mxu0 %v430
        %1418 = vmatpush1.bf16.msra.mxu0 %v429
        %1419 = vmatprep.subr.bf16.mxu0 %v434
        %1420 = vmatpush1.bf16.msra.mxu0 %v433
        %1421 = vmatprep.subr.bf16.mxu0 %v438
        %1422 = vmatpush1.bf16.msra.mxu0 %v437
        %1423 = vmatprep.subr.bf16.mxu0 %v442
        %1424 = vmatpush1.bf16.msra.mxu0 %v441
        %1425 = vmatprep.subr.bf16.mxu0 %v446
        %1426 = vmatpush1.bf16.msra.mxu0 %v445
        %1427 = vmatprep.subr.bf16.mxu0 0
        %1428 = vmatpush1.bf16.msra.mxu0 0
        %1429 = vmatprep.subr.bf16.mxu0 0
        %1430 = vmatpush1.bf16.msra.mxu0 0
        %1431 = vmatprep.subr.bf16.mxu0 0
        %1432 = vmatpush1.bf16.msra.mxu0 0
        %1433 = vmatprep.subr.bf16.mxu0 0
        %1434 = vmatpush1.bf16.msra.mxu0 0
        %1435 = vmatprep.subr.bf16.mxu0 0
        %1436 = vmatpush1.bf16.msra.mxu0 0
        %1437 = vmatprep.subr.bf16.mxu0 0
        %1438 = vmatpush1.bf16.msra.mxu0 0
        %1439 = vmatprep.subr.bf16.mxu0 0
        %1440 = vmatpush1.bf16.msra.mxu0 0
        %1441 = vmatprep.subr.bf16.mxu0 0
        %1442 = vmatpush1.bf16.msra.mxu0 0
        %1443 = vmatprep.mubr.bf16.mxu0 0
        %1444 = vmatmul.mubr.bf16.gmra.mrb[0].mxu0 %v1410
        %v1445 = vpop.f32.mrb[0].mxu0
        %v1446 = vadd.f32 0.0, %v1445
        %v1447 = vpop.f32.mrb[0].mxu0
        %v1448 = vadd.f32 0.0, %v1447
        %v1449 = vpop.f32.mrb[0].mxu0
        %v1450 = vpop.f32.mrb[0].mxu0
        %1451 = vdwg.mxu0
        %1452 = vmatprep.subr.bf16.mxu0 %v420
        %1453 = vmatpush1.bf16.msra.mxu0 %v419
        %1454 = vmatprep.subr.bf16.mxu0 %v424
        %1455 = vmatpush1.bf16.msra.mxu0 %v423
        %1456 = vmatprep.subr.bf16.mxu0 %v428
        %1457 = vmatpush1.bf16.msra.mxu0 %v427
        %1458 = vmatprep.subr.bf16.mxu0 %v432
        %1459 = vmatpush1.bf16.msra.mxu0 %v431
        %1460 = vmatprep.subr.bf16.mxu0 %v436
        %1461 = vmatpush1.bf16.msra.mxu0 %v435
        %1462 = vmatprep.subr.bf16.mxu0 %v440
        %1463 = vmatpush1.bf16.msra.mxu0 %v439
        %1464 = vmatprep.subr.bf16.mxu0 %v444
        %1465 = vmatpush1.bf16.msra.mxu0 %v443
        %1466 = vmatprep.subr.bf16.mxu0 %v448
        %1467 = vmatpush1.bf16.msra.mxu0 %v447
        %1468 = vmatprep.subr.bf16.mxu0 0
        %1469 = vmatpush1.bf16.msra.mxu0 0
        %1470 = vmatprep.subr.bf16.mxu0 0
        %1471 = vmatpush1.bf16.msra.mxu0 0
        %1472 = vmatprep.subr.bf16.mxu0 0
        %1473 = vmatpush1.bf16.msra.mxu0 0
        %1474 = vmatprep.subr.bf16.mxu0 0
        %1475 = vmatpush1.bf16.msra.mxu0 0
        %1476 = vmatprep.subr.bf16.mxu0 0
        %1477 = vmatpush1.bf16.msra.mxu0 0
        %1478 = vmatprep.subr.bf16.mxu0 0
        %1479 = vmatpush1.bf16.msra.mxu0 0
        %1480 = vmatprep.subr.bf16.mxu0 0
        %1481 = vmatpush1.bf16.msra.mxu0 0
        %1482 = vmatprep.subr.bf16.mxu0 0
        %1483 = vmatpush1.bf16.msra.mxu0 0
        %1484 = vmatprep.mubr.bf16.mxu0 0
        %1485 = vmatmul.mubr.bf16.gmra.mrb[0].mxu0 %v1410
        %v1486 = vpop.f32.mrb[0].mxu0
        %v1487 = vadd.f32 0.0, %v1486
        %v1488 = vpop.f32.mrb[0].mxu0
        %v1489 = vadd.f32 0.0, %v1488
        %v1490 = vpop.f32.mrb[0].mxu0
        %v1491 = vpop.f32.mrb[0].mxu0
        %1492 = vdwg.mxu0
        %v1493 = vadd.f32 %v1406, %v1446
        %v1494 = vadd.f32 %v1407, %v1448
        %v1495 = vadd.f32 %v1408, %v1487
        %v1496 = vadd.f32 %v1409, %v1489
        %v1497 = vxor.u32 %v1493, 2147483648
        %v1498 = vmul.f32 %v1497, 1.442695
        %v1499 = vpow.pop %v1498
        %v1500 = vadd.f32 %v1499, 1.0
        %v1501 = vrcp.pop %v1500
        %v1502 = vmul.f32 1.0, %v1501
        %v1503 = vxor.u32 %v1494, 2147483648
        %v1504 = vmul.f32 %v1503, 1.442695
        %v1505 = vpow.pop %v1504
        %v1506 = vadd.f32 %v1505, 1.0
        %v1507 = vrcp.pop %v1506
        %v1508 = vmul.f32 1.0, %v1507
        %v1509 = vtanh.pop %v1495
        %v1510 = vxor.u32 %v1496, 2147483648
        %v1511 = vmul.f32 %v1510, 1.442695
        %v1512 = vpow.pop %v1511
        %v1513 = vadd.f32 %v1512, 1.0
        %v1514 = vrcp.pop %v1513
        %v1515 = vmul.f32 1.0, %v1514
        %v1516 = vmul.f32 %v1508, %v1404
        %v1517 = vmul.f32 %v1502, %v1509
        %v1518 = vadd.f32 %v1516, %v1517
        %v1519 = vtanh.pop %v1518
        %v1520 = vmul.f32 %v1515, %v1519
        %v1521 = vstv %s1402
        %vm1522 = vcmp.lt.s32.totalorder %v1521, %v280
        %v1523 = vsel %vm1522, 1, 0
        %1524 = vset.pattern.permute.xlu0 0
        %1525 = vperm.xlu0 %1524, %v1523
        %v1526 = vpop.permute.xlu0 %1525
        %vm1527 = vcmp.eq.s32.totalorder %v1526, 1
        %v1528 = vsel %vm1527, %v1520, %v1403
        %1529 = vst [vmem:[#allocation2] sm:$0xff] %v1528
        %v1530 = vsel %vm1527, %v1518, %v1404
        %1531 = vst [vmem:[#allocation3] sm:$0xff] %v1530
        %v1532 = vsel %vm1527, %v1520, 0.0
        %s1533 = scalar_lea.vmem %s264, 56 [#allocation9]
        %1534 = vst [vmem:[%s1533] sm:$0xff] %v1532
        %p1535 = scmp.eq.s32.totalorder %s29, 1
        // Predicated region
        $region45: #{tpu_custom_call.1} parent=31 // pred_check
          %p1536 = pneg %p1535
        $region46: #{tpu_custom_call.1} parent=31 // pred_check_branch
          %1538 = sbr.rel (%p1536) target = $region48
        $region47: #{tpu_custom_call.1} parent=31 // pred_region
          %v1539 = vld [vmem:[#allocation2] sm:$0xff]
          %1540 = vst [vmem:[#allocation10] sm:$0xff] %v1539
        $region48: #{tpu_custom_call.1} parent=31 // pred_fallthru
          _
        %s1541 = sand.u32 %s121, 1
        %s1542 = scalar_lea.sflag [#allocation6], %s1541
        %s1543 = sand.u32 %s121, 1
        %s1544 = smul.addr %s1543, 64
        %s1545 = scalar_lea.vmem [#allocation9], %s1544
        // Predicated region
        $region49: #{tpu_custom_call.1} parent=31 // pred_check
          %p1546 = pneg %p131
        $region50: #{tpu_custom_call.1} parent=31 // pred_check_branch
          %1548 = sbr.rel (%p1546) target = $region52
        $region51: #{tpu_custom_call.1} parent=31 // pred_region
          %s1549 = smul.u32 8, %s29
          %s1551 = ssub.s32 1024, 1024
          %1552 = vsyncadd %s1542, %s1551
          %s1553 = sadd.s32 %s28, %s1549
          %s1554 = smul.addr %s1553, 128
          %s1555 = scalar_lea.hbm %s3, %s1554
          %s1556 = sshll.u32 %s1545, 4
          %s1557 = int_to_ptr.vmem [resolvable:$true] %s1556
          %1562 = dma.vmem_to_hbm [thread:$0]  %s1557, 1024, %s1555, %s1542, 128, 128, 8
        $region52: #{tpu_custom_call.1} parent=31 // pred_fallthru
          _
        // Predicated region
        $region53: #{tpu_custom_call.1} parent=31 // pred_check
          %p1563 = pneg %p157
        $region54: #{tpu_custom_call.1} parent=31 // pred_check_branch
          %1565 = sbr.rel (%p1563) target = $region56
        $region55: #{tpu_custom_call.1} parent=31 // pred_region
          %s1567 = ssub.s32 128, 128
          %1568 = vsyncadd [#allocation11], %s1567
          %s1569 = smul.addr %s28, 128
          %s1570 = scalar_lea.hbm %s4, %s1569
          %s1572 = sshll.u32 [#allocation10], 4
          %s1573 = int_to_ptr.vmem [resolvable:$true] %s1572
          %1575 = dma.vmem_to_hbm [thread:$0]  %s1573, 128, %s1570, [#allocation11]
        $region56: #{tpu_custom_call.1} parent=31 // pred_fallthru
          _
        // Predicated region
        $region57: #{tpu_custom_call.1} parent=31 // pred_check
          %p1576 = pneg %p157
        $region58: #{tpu_custom_call.1} parent=31 // pred_check_branch
          %1578 = sbr.rel (%p1576) target = $region60
        $region59: #{tpu_custom_call.1} parent=31 // pred_region
          %1579 = dma.done [#allocation11], 128
        $region60: #{tpu_custom_call.1} parent=31 // pred_fallthru
          _
      $region32: #{tpu_custom_call.1} parent=5 // pred_fallthru
        _
      %p1580 = scmp.le.s32.totalorder 2, %s19
      // Predicated region
      $region61: #{tpu_custom_call.1} parent=5 // pred_check
        %p1581 = pneg %p1580
      $region62: #{tpu_custom_call.1} parent=5 // pred_check_branch
        %1583 = sbr.rel (%p1581) target = $region64
      $region63: #{tpu_custom_call.1} parent=5 // pred_region
        %s1584 = ssub.s32 %s19, 2
        // Predicated region
        $region65: #{tpu_custom_call.1} parent=63 // pred_check
          %p1585 = pneg %p137
        $region66: #{tpu_custom_call.1} parent=63 // pred_check_branch
          %1587 = sbr.rel (%p1585) target = $region68
        $region67: #{tpu_custom_call.1} parent=63 // pred_region
          %s1588 = sand.u32 %s122, 1
          %s1589 = scalar_lea.sflag [#allocation6], %s1588
          %s1590 = sand.u32 %s122, 1
          %s1591 = smul.addr %s1590, 64
          %s1592 = scalar_lea.vmem [#allocation9], %s1591
          %1593 = dma.done %s1589, 1024
        $region68: #{tpu_custom_call.1} parent=63 // pred_fallthru
          _
      $region64: #{tpu_custom_call.1} parent=5 // pred_fallthru
        _
    $region6: #{tpu_custom_call.1} parent=1 // loop_footer
      %s23 = sadd.s32 1, %s19
    $region7: #{tpu_custom_call.1} parent=1 // loop_footer_branch
      %18 = sbr.rel target = $region3
    $region8: #{tpu_custom_call.1} parent=1 // loop_exit
      _
    %1594 = vsyncpa [#allocation5], 1
    %s1595 = scalar_lea.sflag [#allocation5], 1
    %1596 = vsyncpa %s1595, 1
    %1597 = vsyncpa [#allocation8], 1
    %1598 = vsyncpa [#allocation6], 1
    %s1599 = scalar_lea.sflag [#allocation6], 1
    %1600 = vsyncpa %s1599, 1
    %1601 = vsyncpa [#allocation11], 1

</llo_original>
